<compile_context>
chip_gen: v7x
topology: tpu7x:2x2x1
jax: 0.10.0
libtpu: 0.0.40
codegen_flags: <defaults>
</compile_context>

<pallas_src>
import jax
import jax.numpy as jnp
from jax.experimental import pallas as pl
from jax.experimental.pallas import tpu as pltpu


def _round_up(n: int, m: int) -> int:
    return (n + m - 1) // m * m


def _pick_chunk(dp: int, td_max: int) -> int:
    """Largest TD <= td_max that is a multiple of 128 and divides dp."""
    td_max = max(128, (td_max // 128) * 128)
    m = dp // 128
    n0 = -(-dp // td_max)            # cdiv
    for n in range(n0, m + 1):
        if m % n == 0:
            return dp // n
    return 128


def _cls_head_kernel(x_ref, w1_ref, b1_ref, w2_ref, b2_ref, o_ref):
    # One (batch-tile i, pooler-chunk j) grid step.
    #   x_ref : (TB, D)   [CLS] activations, native dtype
    #   w1_ref: (D, TD)   pooler weight chunk, (in, out) layout, native dtype
    #   b1_ref: (1, TD)   f32 pooler bias chunk
    #   w2_ref: (TD, LP)  classifier weight chunk, (in, out), lane-padded
    #   b2_ref: (1, LP)   f32 classifier bias, lane-padded
    #   o_ref : (TB, LP)  f32 logits, accumulated across j chunks
    j = pl.program_id(1)

    @pl.when(j == 0)
    def _init():
        o_ref[...] = jnp.zeros_like(o_ref)

    # Native-dtype MXU matmuls with f32 accumulation (HIGHEST keeps f32 inputs
    # at full precision; for bf16 inputs it is the normal single pass).
    h = jnp.dot(x_ref[...], w1_ref[...],
                preferred_element_type=jnp.float32,
                precision=jax.lax.Precision.HIGHEST)
    h = jnp.tanh(h + b1_ref[...])            # f32 bias add (VPU) + tanh (EUP)
    h = h.astype(w2_ref.dtype)               # back to weight dtype for the MXU
    o_ref[...] += jnp.dot(h, w2_ref[...],
                          preferred_element_type=jnp.float32,
                          precision=jax.lax.Precision.HIGHEST)

    @pl.when(j == pl.num_programs(1) - 1)
    def _finalize():
        o_ref[...] += b2_ref[...]


def prepare_cls_head_params(w1, b1, w2, b2):
    """One-time (init-path) conversion of torch-layout Linear parameters.

    w1: (D, D) torch (out, in) -> (D, DP)  (in, out), pooler-out dim 0-padded
    b1: (D,)                   -> (1, DP)  f32, 0-padded
    w2: (L, D) torch (out, in) -> (DP, LP) (in, out), 0-padded
    b2: (L,)                   -> (1, LP)  f32, 0-padded
    DP = ceil128(D), LP = ceil128(L).  Zero padding is inert: tanh(0)=0 hits
    zero rows of W2, so padded pooler channels contribute nothing.
    """
    d_out, d_in = w1.shape
    num_labels = w2.shape[0]
    dp = _round_up(d_out, 128)
    lp = _round_up(num_labels, 128)
    w1_io = jnp.zeros((d_in, dp), w1.dtype).at[:, :d_out].set(w1.T)
    b1_2d = jnp.zeros((1, dp), jnp.float32).at[:, :d_out].set(b1.astype(jnp.float32))
    w2_io = jnp.zeros((dp, lp), w2.dtype).at[:d_out, :num_labels].set(w2.T)
    b2_2d = jnp.zeros((1, lp), jnp.float32).at[:, :num_labels].set(b2.astype(jnp.float32))
    return w1_io, b1_2d, w2_io, b2_2d, num_labels


def cls_head_forward(x, w1_io, b1_2d, w2_io, b2_2d, num_labels, *, max_td=None):
    """x: (B, S, D).  Params from prepare_cls_head_params.
    Returns float32 logits of shape (B, num_labels)."""
    B, S, D = x.shape
    DP = w1_io.shape[1]
    LP = w2_io.shape[1]
    x_bytes = jnp.dtype(x.dtype).itemsize
    w_bytes = jnp.dtype(w1_io.dtype).itemsize

    # Batch tile: dtype-packed sublane multiple (8 f32 / 16 bf16 / 32 int8),
    # capped at 256 (256-wide MXU on v6e/v7x) or 128 on v5e.
    sub = {4: 8, 2: 16, 1: 32}.get(x_bytes, 8)
    tb_cap = 256
    try:
        if "v5" in jax.devices()[0].device_kind.lower():
            tb_cap = 128
    except Exception:
        pass
    TB = min(tb_cap, max(_round_up(B, sub), sub))

    # [CLS] gather folded into the input DMA: view x as (B, S*D); the BlockSpec
    # window (TB, D) at column-block 0 reads exactly x[:, 0, :] per batch tile.
    if D % 128 == 0:
        x_in = x.reshape(B, S * D)
    else:
        # Lane dim of a block must be a 128-multiple or the full array dim;
        # for unaligned D fall back to a wrapper-side gather (full last dim).
        x_in = x[:, 0, :]
    x_spec = pl.BlockSpec((TB, D), lambda i, j: (i, 0))

    # Chunk the pooler output dim so resident weights fit a ~40 MiB VMEM budget
    # (v7x: 64 MiB/TC).  TD is a multiple of 128 that divides DP.
    target = 40 << 20
    act_bytes = 2 * TB * D * x_bytes + 2 * TB * LP * 4 + LP * 4
    w_full = (D * DP + DP * LP) * w_bytes
    if max_td is not None:
        TD = _pick_chunk(DP, max_td)
    elif w_full <= max(target - act_bytes, 0):
        TD = DP
    else:
        td_max = max((target - act_bytes) // (2 * (D + LP) * w_bytes), 128)
        TD = _pick_chunk(DP, int(td_max))
    n_chunks = DP // TD

    # Constant-index weights need only one VMEM buffer; streamed chunks keep
    # default double-buffering so DMA overlaps compute.
    w_mode = pl.Buffered(1) if n_chunks == 1 else None
    b2_mode = pl.Buffered(1)   # classifier bias is always constant-index

    wbuf = 1 if n_chunks == 1 else 2
    vmem_used = (2 * TB * D * x_bytes                    # x tiles (double-buffered)
                 + wbuf * (D * TD + TD * LP) * w_bytes   # W1 / W2 chunks
                 + wbuf * TD * 4 + LP * 4                # biases (f32)
                 + 2 * TB * LP * 4                       # f32 logits tiles
                 + 2 * TB * TD * 4)                      # pooled intermediate
    vmem_limit = min(max(int(vmem_used * 1.5) + (4 << 20), 16 << 20), 56 << 20)

    cost = pl.CostEstimate(
        flops=2 * B * D * DP + 2 * B * DP * LP,
        transcendentals=B * DP,
        bytes_accessed=B * D * x_bytes + w_full + (DP + LP) * 4 + B * LP * 4)

    out = pl.pallas_call(
        _cls_head_kernel,
        out_shape=jax.ShapeDtypeStruct((B, LP), jnp.float32),
        grid=(pl.cdiv(B, TB), n_chunks),
        in_specs=[
            x_spec,                                                          # [CLS] rows
            pl.BlockSpec((D, TD), lambda i, j: (0, j), pipeline_mode=w_mode),
            pl.BlockSpec((1, TD), lambda i, j: (0, j), pipeline_mode=w_mode),
            pl.BlockSpec((TD, LP), lambda i, j: (j, 0), pipeline_mode=w_mode),
            pl.BlockSpec((1, LP), lambda i, j: (0, 0), pipeline_mode=b2_mode),
        ],
        out_specs=pl.BlockSpec((TB, LP), lambda i, j: (i, 0)),
        compiler_params=pltpu.CompilerParams(
            # TODO(synk): on v7x with small batch, split the DP chunks across
            # the two TensorCores (needs a cross-core logits reduction) instead
            # of the batch axis, to halve per-chip HBM weight traffic.
            dimension_semantics=("parallel", "arbitrary"),
            vmem_limit_bytes=vmem_limit,
        ),
        cost_estimate=cost,
    )(x_in, w1_io, b1_2d, w2_io, b2_2d)

    # Lane-padded f32 logits -> (B, num_labels).  LP padding keeps in-kernel
    # stores lane-dense; the trailing slice is a tiny XLA op (accepted cost).
    return out[:, :num_labels]


def _reference(x, w1, b1, w2, b2):
    with jax.default_matmul_precision("highest"):
        cls_tok = x[:, 0, :].astype(jnp.float32)
        pooled = jnp.tanh(cls_tok @ w1.T.astype(jnp.float32) + b1.astype(jnp.float32))
        return pooled @ w2.T.astype(jnp.float32) + b2.astype(jnp.float32)


if __name__ == "__main__":
    # Small shapes consistent with the module: batch=2, seq=8, embed_dim=256
    # (lane-aligned so the folded [CLS] gather and DP chunking are exercised),
    # num_labels=4.  Note: dropout_p in the torch module is unused in forward.
    B, S, D, L = 2, 8, 256, 4

    key = jax.random.PRNGKey(0)
    kx, kw1, kb1, kw2, kb2 = jax.random.split(key, 5)

    x = jax.random.normal(kx, (B, S, D), dtype=jnp.float32)
    # torch nn.Linear stores weights as (out_features, in_features).
    w1 = jax.random.normal(kw1, (D, D), dtype=jnp.float32) * 0.05
    b1 = jax.random.normal(kb1, (D,), dtype=jnp.float32) * 0.01
    w2 = jax.random.normal(kw2, (L, D), dtype=jnp.float32) * 0.05
    b2 = jax.random.normal(kb2, (L,), dtype=jnp.float32) * 0.01

    w1_io, b1_2d, w2_io, b2_2d, num_labels = prepare_cls_head_params(w1, b1, w2, b2)
    ref = _reference(x, w1, b1, w2, b2)

    # 1) Default path: weights fully resident, single pooler chunk, Buffered(1).
    out = cls_head_forward(x, w1_io, b1_2d, w2_io, b2_2d, num_labels)
    jax.block_until_ready(out)
    assert out.shape == (B, L), out.shape
    err = float(jnp.max(jnp.abs(out - ref)))
    assert err < 1e-3, err

    # 2) Streamed path: force TD=128 chunks to exercise the D_out-tiled
    #    accumulation used when (D, D) weights exceed the VMEM budget (v7x).
    out2 = cls_head_forward(x, w1_io, b1_2d, w2_io, b2_2d, num_labels, max_td=128)
    jax.block_until_ready(out2)
    err2 = float(jnp.max(jnp.abs(out2 - ref)))
    assert err2 < 1e-3, err2

    print("KERNEL_OK")
</pallas_src>

<mosaic_0001>
module attributes {stable_mosaic.version = 11 : i64} {
  func.func @_cls_head_kernel(%arg0: i32, %arg1: i32, %arg2: memref<8x256xf32, #tpu.memory_space<vmem>>, %arg3: memref<256x256xf32, #tpu.memory_space<vmem>>, %arg4: memref<1x256xf32, #tpu.memory_space<vmem>>, %arg5: memref<256x128xf32, #tpu.memory_space<vmem>>, %arg6: memref<1x128xf32, #tpu.memory_space<vmem>>, %arg7: memref<8x128xf32, #tpu.memory_space<vmem>>) attributes {dimension_semantics = [#tpu.dimension_semantics<parallel>, #tpu.dimension_semantics<arbitrary>], iteration_bounds = array<i64: 1, 1>, scalar_prefetch = 0 : i64, scratch_operands = 0 : i64, tpu.core_type = #tpu.core_type<tc>, window_params = [{transform_indices = @transform_0, window_bounds = array<i64: 8, 256>}, {pipeline_mode = #tpu.pipeline_mode<synchronous>, transform_indices = @transform_1, window_bounds = array<i64: 256, 256>}, {pipeline_mode = #tpu.pipeline_mode<synchronous>, transform_indices = @transform_2, window_bounds = array<i64: 1, 256>}, {pipeline_mode = #tpu.pipeline_mode<synchronous>, transform_indices = @transform_3, window_bounds = array<i64: 256, 128>}, {pipeline_mode = #tpu.pipeline_mode<synchronous>, transform_indices = @transform_4, window_bounds = array<i64: 1, 128>}, {transform_indices = @transform_5, window_bounds = array<i64: 8, 128>}]} {
    %c0_i32 = arith.constant 0 : i32
    %0 = arith.cmpi eq, %arg1, %c0_i32 : i32
    %1 = arith.extui %0 : i1 to i32
    %c0_i32_0 = arith.constant 0 : i32
    %2 = arith.cmpi ne, %1, %c0_i32_0 : i32
    scf.if %2 {
      %cst_15 = arith.constant 0.000000e+00 : f32
      %18 = vector.broadcast %cst_15 : f32 to vector<8x128xf32>
      %c0_16 = arith.constant 0 : index
      %c0_17 = arith.constant 0 : index
      %19 = vector.load %arg7[%c0_16, %c0_17] : memref<8x128xf32, #tpu.memory_space<vmem>>, vector<8x128xf32>
      tpu.vector_store %arg7[%c0_16, %c0_17], %18 {strides = array<i32>} : memref<8x128xf32, #tpu.memory_space<vmem>>, vector<8x128xf32>,
    } else {
    }
    %c0 = arith.constant 0 : index
    %c0_1 = arith.constant 0 : index
    %3 = vector.load %arg2[%c0, %c0_1] : memref<8x256xf32, #tpu.memory_space<vmem>>, vector<8x256xf32>
    %c0_2 = arith.constant 0 : index
    %c0_3 = arith.constant 0 : index
    %4 = vector.load %arg3[%c0_2, %c0_3] : memref<256x256xf32, #tpu.memory_space<vmem>>, vector<256x256xf32>
    %cst = arith.constant dense<0.000000e+00> : vector<8x256xf32>
    %5 = tpu.matmul %3, %4, %cst {dimension_numbers = #tpu.dot_dimension_numbers<[1], [0], [0], [1], [0, 0, 1, 1], [], []>, precision = #tpu.contract_precision<fp32>} : vector<8x256xf32>, vector<256x256xf32>, vector<8x256xf32> -> vector<8x256xf32>
    %c0_4 = arith.constant 0 : index
    %c0_5 = arith.constant 0 : index
    %6 = vector.load %arg4[%c0_4, %c0_5] : memref<1x256xf32, #tpu.memory_space<vmem>>, vector<1x256xf32>
    %7 = vector.broadcast %6 : vector<1x256xf32> to vector<8x256xf32>
    %8 = arith.addf %5, %7 : vector<8x256xf32>
    %9 = math.tanh %8 : vector<8x256xf32>
    %c0_6 = arith.constant 0 : index
    %c0_7 = arith.constant 0 : index
    %10 = vector.load %arg7[%c0_6, %c0_7] : memref<8x128xf32, #tpu.memory_space<vmem>>, vector<8x128xf32>
    %c0_8 = arith.constant 0 : index
    %c0_9 = arith.constant 0 : index
    %11 = vector.load %arg5[%c0_8, %c0_9] : memref<256x128xf32, #tpu.memory_space<vmem>>, vector<256x128xf32>
    %cst_10 = arith.constant dense<0.000000e+00> : vector<8x128xf32>
    %12 = tpu.matmul %9, %11, %cst_10 {dimension_numbers = #tpu.dot_dimension_numbers<[1], [0], [0], [1], [0, 0, 1, 1], [], []>, precision = #tpu.contract_precision<fp32>} : vector<8x256xf32>, vector<256x128xf32>, vector<8x128xf32> -> vector<8x128xf32>
    %13 = arith.addf %10, %12 : vector<8x128xf32>
    %c0_11 = arith.constant 0 : index
    %c0_12 = arith.constant 0 : index
    %14 = vector.load %arg7[%c0_11, %c0_12] : memref<8x128xf32, #tpu.memory_space<vmem>>, vector<8x128xf32>
    tpu.vector_store %arg7[%c0_11, %c0_12], %13 {strides = array<i32>} : memref<8x128xf32, #tpu.memory_space<vmem>>, vector<8x128xf32>,
    %c0_i32_13 = arith.constant 0 : i32
    %15 = arith.cmpi eq, %arg1, %c0_i32_13 : i32
    %16 = arith.extui %15 : i1 to i32
    %c0_i32_14 = arith.constant 0 : i32
    %17 = arith.cmpi ne, %16, %c0_i32_14 : i32
    scf.if %17 {
      %c0_15 = arith.constant 0 : index
      %c0_16 = arith.constant 0 : index
      %18 = vector.load %arg7[%c0_15, %c0_16] : memref<8x128xf32, #tpu.memory_space<vmem>>, vector<8x128xf32>
      %c0_17 = arith.constant 0 : index
      %c0_18 = arith.constant 0 : index
      %19 = vector.load %arg6[%c0_17, %c0_18] : memref<1x128xf32, #tpu.memory_space<vmem>>, vector<1x128xf32>
      %20 = vector.broadcast %19 : vector<1x128xf32> to vector<8x128xf32>
      %21 = arith.addf %18, %20 : vector<8x128xf32>
      %c0_19 = arith.constant 0 : index
      %c0_20 = arith.constant 0 : index
      %22 = vector.load %arg7[%c0_19, %c0_20] : memref<8x128xf32, #tpu.memory_space<vmem>>, vector<8x128xf32>
      tpu.vector_store %arg7[%c0_19, %c0_20], %21 {strides = array<i32>} : memref<8x128xf32, #tpu.memory_space<vmem>>, vector<8x128xf32>,
    } else {
    }
    return
  }
  func.func @transform_0(%arg0: i32, %arg1: i32) -> (i32, i32) {
    %c0_i32 = arith.constant 0 : i32
    %c0_i32_0 = arith.constant 0 : i32
    return %arg0, %c0_i32 : i32, i32
  }
  func.func @transform_1(%arg0: i32, %arg1: i32) -> (i32, i32) {
    %c0_i32 = arith.constant 0 : i32
    %c0_i32_0 = arith.constant 0 : i32
    return %c0_i32, %arg1 : i32, i32
  }
  func.func @transform_2(%arg0: i32, %arg1: i32) -> (i32, i32) {
    %c0_i32 = arith.constant 0 : i32
    %c0_i32_0 = arith.constant 0 : i32
    return %c0_i32, %arg1 : i32, i32
  }
  func.func @transform_3(%arg0: i32, %arg1: i32) -> (i32, i32) {
    %c0_i32 = arith.constant 0 : i32
    %c0_i32_0 = arith.constant 0 : i32
    return %arg1, %c0_i32 : i32, i32
  }
  func.func @transform_4(%arg0: i32, %arg1: i32) -> (i32, i32) {
    %c0_i32 = arith.constant 0 : i32
    %c0_i32_0 = arith.constant 0 : i32
    %c0_i32_1 = arith.constant 0 : i32
    return %c0_i32, %c0_i32_0 : i32, i32
  }
  func.func @transform_5(%arg0: i32, %arg1: i32) -> (i32, i32) {
    %c0_i32 = arith.constant 0 : i32
    %c0_i32_0 = arith.constant 0 : i32
    return %arg0, %c0_i32 : i32, i32
  }
}

</mosaic_0001>

<llo_original>
// kernel: tpu_custom_call.1
$region0: #{tpu_custom_call.1}
  #allocation0 [shape = 'u32[]', space=smem, size = 0x4, offset = 0x4, fixed_abs, tag = 'smem constant byte address 0x4 - core index']
  #allocation1 [shape = 'u32[144,128]{1,0:T(1,128)}', space=vmem, size = 0x12000, scoped, tag = 'internal scratch']
  %s0 = inlined_call_operand.hbm [shape: f32[2,2048], index: 0, kind: input, shape index: {}]
  %s1 = inlined_call_operand.hbm [shape: f32[256,256], index: 1, kind: input, shape index: {}]
  %s2 = inlined_call_operand.vmem [shape: f32[1,256], index: 2, kind: input, shape index: {}]
  %s3 = inlined_call_operand.hbm [shape: f32[256,128], index: 3, kind: input, shape index: {}]
  %s4 = inlined_call_operand.vmem [shape: f32[1,128], index: 4, kind: input, shape index: {}]
  %s5 = inlined_call_operand.hbm [shape: f32[2,128], index: 5, kind: output, shape index: {}]
  %s6 = sld [smem:[#allocation0]]
  $region50: #{tpu_custom_call.1} parent=0
    _
  %s8 = ssub.s32 1, %s6
  %s9 = scalar_select 0, %s8, %s6
  $region1: #{tpu_custom_call.1} parent=0
    #allocation2 [shape = 'u8[8192]{0}', space=vmem, size = 0x2000, scoped, tag = 'input window, operand 0, single buffered']
    #allocation3 [shape = 's32[1]{0}', space=sflag, size = 0x4, scoped, tag = 'scoped memory for tpu_custom_call.1']
    #allocation4 [shape = 's32[1]{0}', space=sflag, size = 0x4, scoped, tag = 'scoped memory for tpu_custom_call.1']
    #allocation5 [shape = 'u8[262144]{0}', space=vmem, size = 0x40000, scoped, tag = 'input window, operand 1, single buffered']
    #allocation6 [shape = 's32[1]{0}', space=sflag, size = 0x4, scoped, tag = 'scoped memory for tpu_custom_call.1']
    #allocation7 [shape = 'u8[131072]{0}', space=vmem, size = 0x20000, scoped, tag = 'input window, operand 3, single buffered']
    #allocation8 [shape = 'u8[4096]{0}', space=vmem, size = 0x1000, scoped, tag = 'output window, operand 0, single buffered']
    %10 = vsyncpa [#allocation3], 0
    %11 = vsyncpa [#allocation6], 0
    %12 = vsyncpa [#allocation4], 0
    // Predicated region
    $region2: #{tpu_custom_call.1} parent=1 // pred_check
      _
    $region3: #{tpu_custom_call.1} parent=1 // pred_check_branch
      %14 = sbr.rel (0) target = $region5
    $region4: #{tpu_custom_call.1} parent=1 // pred_region
      %s16 = ssub.s32 256, 64
      %17 = vsyncadd [#allocation3], %s16
      %s18 = sshll.u32 [#allocation2], 4
      %s19 = int_to_ptr.vmem [resolvable:$true] %s18
      %24 = dma.hbm_to_vmem [thread:$0]  %s0, 64, %s19, [#allocation3], 512, 64, 4
    $region5: #{tpu_custom_call.1} parent=1 // pred_fallthru
      _
    // Predicated region
    $region6: #{tpu_custom_call.1} parent=1 // pred_check
      _
    $region7: #{tpu_custom_call.1} parent=1 // pred_check_branch
      %26 = sbr.rel (0) target = $region9
    $region8: #{tpu_custom_call.1} parent=1 // pred_region
      %s28 = ssub.s32 8192, 8192
      %29 = vsyncadd [#allocation6], %s28
      %s30 = sshll.u32 [#allocation5], 4
      %s31 = int_to_ptr.vmem [resolvable:$true] %s30
      %36 = dma.hbm_to_vmem [thread:$0]  %s1, 8192, %s31, [#allocation6], 256, 256, 16
    $region9: #{tpu_custom_call.1} parent=1 // pred_fallthru
      _
    // Predicated region
    $region10: #{tpu_custom_call.1} parent=1 // pred_check
      _
    $region11: #{tpu_custom_call.1} parent=1 // pred_check_branch
      %38 = sbr.rel (0) target = $region13
    $region12: #{tpu_custom_call.1} parent=1 // pred_region
      _
    $region13: #{tpu_custom_call.1} parent=1 // pred_fallthru
      _
    // Predicated region
    $region14: #{tpu_custom_call.1} parent=1 // pred_check
      _
    $region15: #{tpu_custom_call.1} parent=1 // pred_check_branch
      %40 = sbr.rel (0) target = $region17
    $region16: #{tpu_custom_call.1} parent=1 // pred_region
      %s42 = ssub.s32 4096, 4096
      %43 = vsyncadd [#allocation6], %s42
      %s44 = sshll.u32 [#allocation7], 4
      %s45 = int_to_ptr.vmem [resolvable:$true] %s44
      %50 = dma.hbm_to_vmem [thread:$0]  %s3, 4096, %s45, [#allocation6], 128, 128, 8
    $region17: #{tpu_custom_call.1} parent=1 // pred_fallthru
      _
    // Predicated region
    $region18: #{tpu_custom_call.1} parent=1 // pred_check
      _
    $region19: #{tpu_custom_call.1} parent=1 // pred_check_branch
      %52 = sbr.rel (0) target = $region21
    $region20: #{tpu_custom_call.1} parent=1 // pred_region
      _
    $region21: #{tpu_custom_call.1} parent=1 // pred_fallthru
      _
    // Predicated region
    $region22: #{tpu_custom_call.1} parent=1 // pred_check
      _
    $region23: #{tpu_custom_call.1} parent=1 // pred_check_branch
      %54 = sbr.rel (0) target = $region25
    $region24: #{tpu_custom_call.1} parent=1 // pred_region
      %55 = dma.done [#allocation3], 256
    $region25: #{tpu_custom_call.1} parent=1 // pred_fallthru
      _
    // Predicated region
    $region26: #{tpu_custom_call.1} parent=1 // pred_check
      _
    $region27: #{tpu_custom_call.1} parent=1 // pred_check_branch
      %57 = sbr.rel (0) target = $region29
    $region28: #{tpu_custom_call.1} parent=1 // pred_region
      %58 = dma.done [#allocation6], 8192
    $region29: #{tpu_custom_call.1} parent=1 // pred_fallthru
      _
    // Predicated region
    $region30: #{tpu_custom_call.1} parent=1 // pred_check
      _
    $region31: #{tpu_custom_call.1} parent=1 // pred_check_branch
      %60 = sbr.rel (0) target = $region33
    $region32: #{tpu_custom_call.1} parent=1 // pred_region
      %61 = dma.done [#allocation6], 4096
    $region33: #{tpu_custom_call.1} parent=1 // pred_fallthru
      _
    %p62 = scmp.eq.s32.totalorder 0, 0
    // Predicated region
    $region34: #{tpu_custom_call.1} parent=1 // pred_check
      %p63 = pneg %p62
    $region35: #{tpu_custom_call.1} parent=1 // pred_check_branch
      %65 = sbr.rel (%p63) target = $region37
    $region36: #{tpu_custom_call.1} parent=1 // pred_region
      %66 = vst [vmem:[#allocation8] sm:$0xff] 0.0
    $region37: #{tpu_custom_call.1} parent=1 // pred_fallthru
      _
    %v67 = vld [vmem:[#allocation2] sm:$0xf]
    %v68 = vld [vmem:[#allocation2 + $0x4] sm:$0xf]
    %v69 = vld [vmem:[#allocation2 + $0x8] sm:$0xf]
    %v70 = vld [vmem:[#allocation2 + $0xc] sm:$0xf]
    %v71 = vld [vmem:[#allocation5] sm:$0xff]
    %v72 = vld [vmem:[#allocation5 + $0x8] sm:$0xff]
    %v73 = vld [vmem:[#allocation5 + $0x10] sm:$0xff]
    %v74 = vld [vmem:[#allocation5 + $0x18] sm:$0xff]
    %v75 = vld [vmem:[#allocation5 + $0x20] sm:$0xff]
    %v76 = vld [vmem:[#allocation5 + $0x28] sm:$0xff]
    %v77 = vld [vmem:[#allocation5 + $0x30] sm:$0xff]
    %v78 = vld [vmem:[#allocation5 + $0x38] sm:$0xff]
    %v79 = vld [vmem:[#allocation5 + $0x40] sm:$0xff]
    %v80 = vld [vmem:[#allocation5 + $0x48] sm:$0xff]
    %v81 = vld [vmem:[#allocation5 + $0x50] sm:$0xff]
    %v82 = vld [vmem:[#allocation5 + $0x58] sm:$0xff]
    %v83 = vld [vmem:[#allocation5 + $0x60] sm:$0xff]
    %v84 = vld [vmem:[#allocation5 + $0x68] sm:$0xff]
    %v85 = vld [vmem:[#allocation5 + $0x70] sm:$0xff]
    %v86 = vld [vmem:[#allocation5 + $0x78] sm:$0xff]
    %v87 = vld [vmem:[#allocation5 + $0x80] sm:$0xff]
    %v88 = vld [vmem:[#allocation5 + $0x88] sm:$0xff]
    %v89 = vld [vmem:[#allocation5 + $0x90] sm:$0xff]
    %v90 = vld [vmem:[#allocation5 + $0x98] sm:$0xff]
    %v91 = vld [vmem:[#allocation5 + $0xa0] sm:$0xff]
    %v92 = vld [vmem:[#allocation5 + $0xa8] sm:$0xff]
    %v93 = vld [vmem:[#allocation5 + $0xb0] sm:$0xff]
    %v94 = vld [vmem:[#allocation5 + $0xb8] sm:$0xff]
    %v95 = vld [vmem:[#allocation5 + $0xc0] sm:$0xff]
    %v96 = vld [vmem:[#allocation5 + $0xc8] sm:$0xff]
    %v97 = vld [vmem:[#allocation5 + $0xd0] sm:$0xff]
    %v98 = vld [vmem:[#allocation5 + $0xd8] sm:$0xff]
    %v99 = vld [vmem:[#allocation5 + $0xe0] sm:$0xff]
    %v100 = vld [vmem:[#allocation5 + $0xe8] sm:$0xff]
    %v101 = vld [vmem:[#allocation5 + $0xf0] sm:$0xff]
    %v102 = vld [vmem:[#allocation5 + $0xf8] sm:$0xff]
    %v103 = vld [vmem:[#allocation5 + $0x100] sm:$0xff]
    %v104 = vld [vmem:[#allocation5 + $0x108] sm:$0xff]
    %v105 = vld [vmem:[#allocation5 + $0x110] sm:$0xff]
    %v106 = vld [vmem:[#allocation5 + $0x118] sm:$0xff]
    %v107 = vld [vmem:[#allocation5 + $0x120] sm:$0xff]
    %v108 = vld [vmem:[#allocation5 + $0x128] sm:$0xff]
    %v109 = vld [vmem:[#allocation5 + $0x130] sm:$0xff]
    %v110 = vld [vmem:[#allocation5 + $0x138] sm:$0xff]
    %v111 = vld [vmem:[#allocation5 + $0x140] sm:$0xff]
    %v112 = vld [vmem:[#allocation5 + $0x148] sm:$0xff]
    %v113 = vld [vmem:[#allocation5 + $0x150] sm:$0xff]
    %v114 = vld [vmem:[#allocation5 + $0x158] sm:$0xff]
    %v115 = vld [vmem:[#allocation5 + $0x160] sm:$0xff]
    %v116 = vld [vmem:[#allocation5 + $0x168] sm:$0xff]
    %v117 = vld [vmem:[#allocation5 + $0x170] sm:$0xff]
    %v118 = vld [vmem:[#allocation5 + $0x178] sm:$0xff]
    %v119 = vld [vmem:[#allocation5 + $0x180] sm:$0xff]
    %v120 = vld [vmem:[#allocation5 + $0x188] sm:$0xff]
    %v121 = vld [vmem:[#allocation5 + $0x190] sm:$0xff]
    %v122 = vld [vmem:[#allocation5 + $0x198] sm:$0xff]
    %v123 = vld [vmem:[#allocation5 + $0x1a0] sm:$0xff]
    %v124 = vld [vmem:[#allocation5 + $0x1a8] sm:$0xff]
    %v125 = vld [vmem:[#allocation5 + $0x1b0] sm:$0xff]
    %v126 = vld [vmem:[#allocation5 + $0x1b8] sm:$0xff]
    %v127 = vld [vmem:[#allocation5 + $0x1c0] sm:$0xff]
    %v128 = vld [vmem:[#allocation5 + $0x1c8] sm:$0xff]
    %v129 = vld [vmem:[#allocation5 + $0x1d0] sm:$0xff]
    %v130 = vld [vmem:[#allocation5 + $0x1d8] sm:$0xff]
    %v131 = vld [vmem:[#allocation5 + $0x1e0] sm:$0xff]
    %v132 = vld [vmem:[#allocation5 + $0x1e8] sm:$0xff]
    %v133 = vld [vmem:[#allocation5 + $0x1f0] sm:$0xff]
    %v134 = vld [vmem:[#allocation5 + $0x1f8] sm:$0xff]
    %v135 = vld [vmem:[%s2] sm:$0x3]
    %v137 = vlaneseq
    %v138 = vshrl.u32 %v137, 7
    %v139 = vsub.s32 0, %v138
    %v140 = vrot.slane %v135, %v139
    %v141 = vlaneseq
    %v142 = vshrl.u32 %v141, 7
    %v143 = vsub.s32 1, %v142
    %v144 = vrot.slane %v135, %v143
    %v151 = vcombine.low %v67, %v68
    %v152 = vcombine.low %v69, %v70
    %v154 = vunpack.c.l.s4 1983009808
    %v155 = vunpack.c.0.s8 %v154
    %v156 = vlaneseq
    %v157 = vshrl.u32 %v156, 7
    %v158 = vsub.s32 %v155, %v157
    %v159 = vrot.slane %v151, %v158
    %v161 = vunpack.c.l.s4 1983009808
    %v162 = vunpack.c.0.s8 %v161
    %v163 = vlaneseq
    %v164 = vshrl.u32 %v163, 7
    %v165 = vsub.s32 %v162, %v164
    %v166 = vrot.slane %v152, %v165
    %v167 = vcombine.low %v159, %v166
    %v168 = vcombine.high %v159, %v166
    %v171 = vand.u32 %v72, 4294901760
    %172 = vmatprep.subr.mxu0 %v171
    %v173 = vand.u32 %v71, 4294901760
    %174 = vmatpush1.msra.mxu0 %v173
    %v175 = vand.u32 %v74, 4294901760
    %176 = vmatprep.subr.mxu0 %v175
    %v177 = vand.u32 %v73, 4294901760
    %178 = vmatpush1.msra.mxu0 %v177
    %v179 = vand.u32 %v76, 4294901760
    %180 = vmatprep.subr.mxu0 %v179
    %v181 = vand.u32 %v75, 4294901760
    %182 = vmatpush1.msra.mxu0 %v181
    %v183 = vand.u32 %v78, 4294901760
    %184 = vmatprep.subr.mxu0 %v183
    %v185 = vand.u32 %v77, 4294901760
    %186 = vmatpush1.msra.mxu0 %v185
    %v187 = vand.u32 %v80, 4294901760
    %188 = vmatprep.subr.mxu0 %v187
    %v189 = vand.u32 %v79, 4294901760
    %190 = vmatpush1.msra.mxu0 %v189
    %v191 = vand.u32 %v82, 4294901760
    %192 = vmatprep.subr.mxu0 %v191
    %v193 = vand.u32 %v81, 4294901760
    %194 = vmatpush1.msra.mxu0 %v193
    %v195 = vand.u32 %v84, 4294901760
    %196 = vmatprep.subr.mxu0 %v195
    %v197 = vand.u32 %v83, 4294901760
    %198 = vmatpush1.msra.mxu0 %v197
    %v199 = vand.u32 %v86, 4294901760
    %200 = vmatprep.subr.mxu0 %v199
    %v201 = vand.u32 %v85, 4294901760
    %202 = vmatpush1.msra.mxu0 %v201
    %v203 = vand.u32 %v88, 4294901760
    %204 = vmatprep.subr.mxu0 %v203
    %v205 = vand.u32 %v87, 4294901760
    %206 = vmatpush1.msra.mxu0 %v205
    %v207 = vand.u32 %v90, 4294901760
    %208 = vmatprep.subr.mxu0 %v207
    %v209 = vand.u32 %v89, 4294901760
    %210 = vmatpush1.msra.mxu0 %v209
    %v211 = vand.u32 %v92, 4294901760
    %212 = vmatprep.subr.mxu0 %v211
    %v213 = vand.u32 %v91, 4294901760
    %214 = vmatpush1.msra.mxu0 %v213
    %v215 = vand.u32 %v94, 4294901760
    %216 = vmatprep.subr.mxu0 %v215
    %v217 = vand.u32 %v93, 4294901760
    %218 = vmatpush1.msra.mxu0 %v217
    %v219 = vand.u32 %v96, 4294901760
    %220 = vmatprep.subr.mxu0 %v219
    %v221 = vand.u32 %v95, 4294901760
    %222 = vmatpush1.msra.mxu0 %v221
    %v223 = vand.u32 %v98, 4294901760
    %224 = vmatprep.subr.mxu0 %v223
    %v225 = vand.u32 %v97, 4294901760
    %226 = vmatpush1.msra.mxu0 %v225
    %v227 = vand.u32 %v100, 4294901760
    %228 = vmatprep.subr.mxu0 %v227
    %v229 = vand.u32 %v99, 4294901760
    %230 = vmatpush1.msra.mxu0 %v229
    %v231 = vand.u32 %v102, 4294901760
    %232 = vmatprep.subr.mxu0 %v231
    %v233 = vand.u32 %v101, 4294901760
    %234 = vmatpush1.msra.mxu0 %v233
    %v235 = vand.u32 %v104, 4294901760
    %236 = vmatprep.subr.mxu0 %v235
    %v237 = vand.u32 %v103, 4294901760
    %238 = vmatpush1.msra.mxu0 %v237
    %v239 = vand.u32 %v106, 4294901760
    %240 = vmatprep.subr.mxu0 %v239
    %v241 = vand.u32 %v105, 4294901760
    %242 = vmatpush1.msra.mxu0 %v241
    %v243 = vand.u32 %v108, 4294901760
    %244 = vmatprep.subr.mxu0 %v243
    %v245 = vand.u32 %v107, 4294901760
    %246 = vmatpush1.msra.mxu0 %v245
    %v247 = vand.u32 %v110, 4294901760
    %248 = vmatprep.subr.mxu0 %v247
    %v249 = vand.u32 %v109, 4294901760
    %250 = vmatpush1.msra.mxu0 %v249
    %v251 = vand.u32 %v112, 4294901760
    %252 = vmatprep.subr.mxu0 %v251
    %v253 = vand.u32 %v111, 4294901760
    %254 = vmatpush1.msra.mxu0 %v253
    %v255 = vand.u32 %v114, 4294901760
    %256 = vmatprep.subr.mxu0 %v255
    %v257 = vand.u32 %v113, 4294901760
    %258 = vmatpush1.msra.mxu0 %v257
    %v259 = vand.u32 %v116, 4294901760
    %260 = vmatprep.subr.mxu0 %v259
    %v261 = vand.u32 %v115, 4294901760
    %262 = vmatpush1.msra.mxu0 %v261
    %v263 = vand.u32 %v118, 4294901760
    %264 = vmatprep.subr.mxu0 %v263
    %v265 = vand.u32 %v117, 4294901760
    %266 = vmatpush1.msra.mxu0 %v265
    %v267 = vand.u32 %v120, 4294901760
    %268 = vmatprep.subr.mxu0 %v267
    %v269 = vand.u32 %v119, 4294901760
    %270 = vmatpush1.msra.mxu0 %v269
    %v271 = vand.u32 %v122, 4294901760
    %272 = vmatprep.subr.mxu0 %v271
    %v273 = vand.u32 %v121, 4294901760
    %274 = vmatpush1.msra.mxu0 %v273
    %v275 = vand.u32 %v124, 4294901760
    %276 = vmatprep.subr.mxu0 %v275
    %v277 = vand.u32 %v123, 4294901760
    %278 = vmatpush1.msra.mxu0 %v277
    %v279 = vand.u32 %v126, 4294901760
    %280 = vmatprep.subr.mxu0 %v279
    %v281 = vand.u32 %v125, 4294901760
    %282 = vmatpush1.msra.mxu0 %v281
    %v283 = vand.u32 %v128, 4294901760
    %284 = vmatprep.subr.mxu0 %v283
    %v285 = vand.u32 %v127, 4294901760
    %286 = vmatpush1.msra.mxu0 %v285
    %v287 = vand.u32 %v130, 4294901760
    %288 = vmatprep.subr.mxu0 %v287
    %v289 = vand.u32 %v129, 4294901760
    %290 = vmatpush1.msra.mxu0 %v289
    %v291 = vand.u32 %v132, 4294901760
    %292 = vmatprep.subr.mxu0 %v291
    %v293 = vand.u32 %v131, 4294901760
    %294 = vmatpush1.msra.mxu0 %v293
    %v295 = vand.u32 %v134, 4294901760
    %296 = vmatprep.subr.mxu0 %v295
    %v297 = vand.u32 %v133, 4294901760
    %298 = vmatpush1.msra.mxu0 %v297
    %v299 = vand.u32 %v168, 4294901760
    %v300 = vsub.f32 %v168, %v299
    %v301 = vand.u32 %v300, 4294901760
    %v302 = vsub.f32 %v300, %v301
    %v303 = vand.u32 %v302, 4294901760
    %304 = vmatprep.mubr.f32.mxu0 %v303
    %v305 = vand.u32 %v167, 4294901760
    %v306 = vsub.f32 %v167, %v305
    %v307 = vand.u32 %v306, 4294901760
    %v308 = vsub.f32 %v306, %v307
    %v309 = vand.u32 %v308, 4294901760
    %310 = vmatmul.mubr.f32.gmra.mrb[0].mxu0 %v309
    %v311 = vpop.f32.mrb[0].mxu0
    %v312 = vadd.f32 %v140, %v311
    %v313 = vpop.f32.mrb[0].mxu0
    %v314 = vadd.f32 %v144, %v313
    %315 = vdwg.mxu0
    %v316 = vand.u32 %v72, 4294901760
    %v317 = vsub.f32 %v72, %v316
    %v318 = vand.u32 %v317, 4294901760
    %v319 = vsub.f32 %v317, %v318
    %v320 = vand.u32 %v319, 4294901760
    %321 = vmatprep.subr.mxu0 %v320
    %v322 = vand.u32 %v71, 4294901760
    %v323 = vsub.f32 %v71, %v322
    %v324 = vand.u32 %v323, 4294901760
    %v325 = vsub.f32 %v323, %v324
    %v326 = vand.u32 %v325, 4294901760
    %327 = vmatpush1.msra.mxu0 %v326
    %v328 = vand.u32 %v74, 4294901760
    %v329 = vsub.f32 %v74, %v328
    %v330 = vand.u32 %v329, 4294901760
    %v331 = vsub.f32 %v329, %v330
    %v332 = vand.u32 %v331, 4294901760
    %333 = vmatprep.subr.mxu0 %v332
    %v334 = vand.u32 %v73, 4294901760
    %v335 = vsub.f32 %v73, %v334
    %v336 = vand.u32 %v335, 4294901760
    %v337 = vsub.f32 %v335, %v336
    %v338 = vand.u32 %v337, 4294901760
    %339 = vmatpush1.msra.mxu0 %v338
    %v340 = vand.u32 %v76, 4294901760
    %v341 = vsub.f32 %v76, %v340
    %v342 = vand.u32 %v341, 4294901760
    %v343 = vsub.f32 %v341, %v342
    %v344 = vand.u32 %v343, 4294901760
    %345 = vmatprep.subr.mxu0 %v344
    %v346 = vand.u32 %v75, 4294901760
    %v347 = vsub.f32 %v75, %v346
    %v348 = vand.u32 %v347, 4294901760
    %v349 = vsub.f32 %v347, %v348
    %v350 = vand.u32 %v349, 4294901760
    %351 = vmatpush1.msra.mxu0 %v350
    %v352 = vand.u32 %v78, 4294901760
    %v353 = vsub.f32 %v78, %v352
    %v354 = vand.u32 %v353, 4294901760
    %v355 = vsub.f32 %v353, %v354
    %v356 = vand.u32 %v355, 4294901760
    %357 = vmatprep.subr.mxu0 %v356
    %v358 = vand.u32 %v77, 4294901760
    %v359 = vsub.f32 %v77, %v358
    %v360 = vand.u32 %v359, 4294901760
    %v361 = vsub.f32 %v359, %v360
    %v362 = vand.u32 %v361, 4294901760
    %363 = vmatpush1.msra.mxu0 %v362
    %v364 = vand.u32 %v80, 4294901760
    %v365 = vsub.f32 %v80, %v364
    %v366 = vand.u32 %v365, 4294901760
    %v367 = vsub.f32 %v365, %v366
    %v368 = vand.u32 %v367, 4294901760
    %369 = vmatprep.subr.mxu0 %v368
    %v370 = vand.u32 %v79, 4294901760
    %v371 = vsub.f32 %v79, %v370
    %v372 = vand.u32 %v371, 4294901760
    %v373 = vsub.f32 %v371, %v372
    %v374 = vand.u32 %v373, 4294901760
    %375 = vmatpush1.msra.mxu0 %v374
    %v376 = vand.u32 %v82, 4294901760
    %v377 = vsub.f32 %v82, %v376
    %v378 = vand.u32 %v377, 4294901760
    %v379 = vsub.f32 %v377, %v378
    %v380 = vand.u32 %v379, 4294901760
    %381 = vmatprep.subr.mxu0 %v380
    %v382 = vand.u32 %v81, 4294901760
    %v383 = vsub.f32 %v81, %v382
    %v384 = vand.u32 %v383, 4294901760
    %v385 = vsub.f32 %v383, %v384
    %v386 = vand.u32 %v385, 4294901760
    %387 = vmatpush1.msra.mxu0 %v386
    %v388 = vand.u32 %v84, 4294901760
    %v389 = vsub.f32 %v84, %v388
    %v390 = vand.u32 %v389, 4294901760
    %v391 = vsub.f32 %v389, %v390
    %v392 = vand.u32 %v391, 4294901760
    %393 = vmatprep.subr.mxu0 %v392
    %v394 = vand.u32 %v83, 4294901760
    %v395 = vsub.f32 %v83, %v394
    %v396 = vand.u32 %v395, 4294901760
    %v397 = vsub.f32 %v395, %v396
    %v398 = vand.u32 %v397, 4294901760
    %399 = vmatpush1.msra.mxu0 %v398
    %v400 = vand.u32 %v86, 4294901760
    %v401 = vsub.f32 %v86, %v400
    %v402 = vand.u32 %v401, 4294901760
    %v403 = vsub.f32 %v401, %v402
    %v404 = vand.u32 %v403, 4294901760
    %405 = vmatprep.subr.mxu0 %v404
    %v406 = vand.u32 %v85, 4294901760
    %v407 = vsub.f32 %v85, %v406
    %v408 = vand.u32 %v407, 4294901760
    %v409 = vsub.f32 %v407, %v408
    %v410 = vand.u32 %v409, 4294901760
    %411 = vmatpush1.msra.mxu0 %v410
    %v412 = vand.u32 %v88, 4294901760
    %v413 = vsub.f32 %v88, %v412
    %v414 = vand.u32 %v413, 4294901760
    %v415 = vsub.f32 %v413, %v414
    %v416 = vand.u32 %v415, 4294901760
    %417 = vmatprep.subr.mxu0 %v416
    %v418 = vand.u32 %v87, 4294901760
    %v419 = vsub.f32 %v87, %v418
    %v420 = vand.u32 %v419, 4294901760
    %v421 = vsub.f32 %v419, %v420
    %v422 = vand.u32 %v421, 4294901760
    %423 = vmatpush1.msra.mxu0 %v422
    %v424 = vand.u32 %v90, 4294901760
    %v425 = vsub.f32 %v90, %v424
    %v426 = vand.u32 %v425, 4294901760
    %v427 = vsub.f32 %v425, %v426
    %v428 = vand.u32 %v427, 4294901760
    %429 = vmatprep.subr.mxu0 %v428
    %v430 = vand.u32 %v89, 4294901760
    %v431 = vsub.f32 %v89, %v430
    %v432 = vand.u32 %v431, 4294901760
    %v433 = vsub.f32 %v431, %v432
    %v434 = vand.u32 %v433, 4294901760
    %435 = vmatpush1.msra.mxu0 %v434
    %v436 = vand.u32 %v92, 4294901760
    %v437 = vsub.f32 %v92, %v436
    %v438 = vand.u32 %v437, 4294901760
    %v439 = vsub.f32 %v437, %v438
    %v440 = vand.u32 %v439, 4294901760
    %441 = vmatprep.subr.mxu0 %v440
    %v442 = vand.u32 %v91, 4294901760
    %v443 = vsub.f32 %v91, %v442
    %v444 = vand.u32 %v443, 4294901760
    %v445 = vsub.f32 %v443, %v444
    %v446 = vand.u32 %v445, 4294901760
    %447 = vmatpush1.msra.mxu0 %v446
    %v448 = vand.u32 %v94, 4294901760
    %v449 = vsub.f32 %v94, %v448
    %v450 = vand.u32 %v449, 4294901760
    %v451 = vsub.f32 %v449, %v450
    %v452 = vand.u32 %v451, 4294901760
    %453 = vmatprep.subr.mxu0 %v452
    %v454 = vand.u32 %v93, 4294901760
    %v455 = vsub.f32 %v93, %v454
    %v456 = vand.u32 %v455, 4294901760
    %v457 = vsub.f32 %v455, %v456
    %v458 = vand.u32 %v457, 4294901760
    %459 = vmatpush1.msra.mxu0 %v458
    %v460 = vand.u32 %v96, 4294901760
    %v461 = vsub.f32 %v96, %v460
    %v462 = vand.u32 %v461, 4294901760
    %v463 = vsub.f32 %v461, %v462
    %v464 = vand.u32 %v463, 4294901760
    %465 = vmatprep.subr.mxu0 %v464
    %v466 = vand.u32 %v95, 4294901760
    %v467 = vsub.f32 %v95, %v466
    %v468 = vand.u32 %v467, 4294901760
    %v469 = vsub.f32 %v467, %v468
    %v470 = vand.u32 %v469, 4294901760
    %471 = vmatpush1.msra.mxu0 %v470
    %v472 = vand.u32 %v98, 4294901760
    %v473 = vsub.f32 %v98, %v472
    %v474 = vand.u32 %v473, 4294901760
    %v475 = vsub.f32 %v473, %v474
    %v476 = vand.u32 %v475, 4294901760
    %477 = vmatprep.subr.mxu0 %v476
    %v478 = vand.u32 %v97, 4294901760
    %v479 = vsub.f32 %v97, %v478
    %v480 = vand.u32 %v479, 4294901760
    %v481 = vsub.f32 %v479, %v480
    %v482 = vand.u32 %v481, 4294901760
    %483 = vmatpush1.msra.mxu0 %v482
    %v484 = vand.u32 %v100, 4294901760
    %v485 = vsub.f32 %v100, %v484
    %v486 = vand.u32 %v485, 4294901760
    %v487 = vsub.f32 %v485, %v486
    %v488 = vand.u32 %v487, 4294901760
    %489 = vmatprep.subr.mxu0 %v488
    %v490 = vand.u32 %v99, 4294901760
    %v491 = vsub.f32 %v99, %v490
    %v492 = vand.u32 %v491, 4294901760
    %v493 = vsub.f32 %v491, %v492
    %v494 = vand.u32 %v493, 4294901760
    %495 = vmatpush1.msra.mxu0 %v494
    %v496 = vand.u32 %v102, 4294901760
    %v497 = vsub.f32 %v102, %v496
    %v498 = vand.u32 %v497, 4294901760
    %v499 = vsub.f32 %v497, %v498
    %v500 = vand.u32 %v499, 4294901760
    %501 = vmatprep.subr.mxu0 %v500
    %v502 = vand.u32 %v101, 4294901760
    %v503 = vsub.f32 %v101, %v502
    %v504 = vand.u32 %v503, 4294901760
    %v505 = vsub.f32 %v503, %v504
    %v506 = vand.u32 %v505, 4294901760
    %507 = vmatpush1.msra.mxu0 %v506
    %v508 = vand.u32 %v104, 4294901760
    %v509 = vsub.f32 %v104, %v508
    %v510 = vand.u32 %v509, 4294901760
    %v511 = vsub.f32 %v509, %v510
    %v512 = vand.u32 %v511, 4294901760
    %513 = vmatprep.subr.mxu0 %v512
    %v514 = vand.u32 %v103, 4294901760
    %v515 = vsub.f32 %v103, %v514
    %v516 = vand.u32 %v515, 4294901760
    %v517 = vsub.f32 %v515, %v516
    %v518 = vand.u32 %v517, 4294901760
    %519 = vmatpush1.msra.mxu0 %v518
    %v520 = vand.u32 %v106, 4294901760
    %v521 = vsub.f32 %v106, %v520
    %v522 = vand.u32 %v521, 4294901760
    %v523 = vsub.f32 %v521, %v522
    %v524 = vand.u32 %v523, 4294901760
    %525 = vmatprep.subr.mxu0 %v524
    %v526 = vand.u32 %v105, 4294901760
    %v527 = vsub.f32 %v105, %v526
    %v528 = vand.u32 %v527, 4294901760
    %v529 = vsub.f32 %v527, %v528
    %v530 = vand.u32 %v529, 4294901760
    %531 = vmatpush1.msra.mxu0 %v530
    %v532 = vand.u32 %v108, 4294901760
    %v533 = vsub.f32 %v108, %v532
    %v534 = vand.u32 %v533, 4294901760
    %v535 = vsub.f32 %v533, %v534
    %v536 = vand.u32 %v535, 4294901760
    %537 = vmatprep.subr.mxu0 %v536
    %v538 = vand.u32 %v107, 4294901760
    %v539 = vsub.f32 %v107, %v538
    %v540 = vand.u32 %v539, 4294901760
    %v541 = vsub.f32 %v539, %v540
    %v542 = vand.u32 %v541, 4294901760
    %543 = vmatpush1.msra.mxu0 %v542
    %v544 = vand.u32 %v110, 4294901760
    %v545 = vsub.f32 %v110, %v544
    %v546 = vand.u32 %v545, 4294901760
    %v547 = vsub.f32 %v545, %v546
    %v548 = vand.u32 %v547, 4294901760
    %549 = vmatprep.subr.mxu0 %v548
    %v550 = vand.u32 %v109, 4294901760
    %v551 = vsub.f32 %v109, %v550
    %v552 = vand.u32 %v551, 4294901760
    %v553 = vsub.f32 %v551, %v552
    %v554 = vand.u32 %v553, 4294901760
    %555 = vmatpush1.msra.mxu0 %v554
    %v556 = vand.u32 %v112, 4294901760
    %v557 = vsub.f32 %v112, %v556
    %v558 = vand.u32 %v557, 4294901760
    %v559 = vsub.f32 %v557, %v558
    %v560 = vand.u32 %v559, 4294901760
    %561 = vmatprep.subr.mxu0 %v560
    %v562 = vand.u32 %v111, 4294901760
    %v563 = vsub.f32 %v111, %v562
    %v564 = vand.u32 %v563, 4294901760
    %v565 = vsub.f32 %v563, %v564
    %v566 = vand.u32 %v565, 4294901760
    %567 = vmatpush1.msra.mxu0 %v566
    %v568 = vand.u32 %v114, 4294901760
    %v569 = vsub.f32 %v114, %v568
    %v570 = vand.u32 %v569, 4294901760
    %v571 = vsub.f32 %v569, %v570
    %v572 = vand.u32 %v571, 4294901760
    %573 = vmatprep.subr.mxu0 %v572
    %v574 = vand.u32 %v113, 4294901760
    %v575 = vsub.f32 %v113, %v574
    %v576 = vand.u32 %v575, 4294901760
    %v577 = vsub.f32 %v575, %v576
    %v578 = vand.u32 %v577, 4294901760
    %579 = vmatpush1.msra.mxu0 %v578
    %v580 = vand.u32 %v116, 4294901760
    %v581 = vsub.f32 %v116, %v580
    %v582 = vand.u32 %v581, 4294901760
    %v583 = vsub.f32 %v581, %v582
    %v584 = vand.u32 %v583, 4294901760
    %585 = vmatprep.subr.mxu0 %v584
    %v586 = vand.u32 %v115, 4294901760
    %v587 = vsub.f32 %v115, %v586
    %v588 = vand.u32 %v587, 4294901760
    %v589 = vsub.f32 %v587, %v588
    %v590 = vand.u32 %v589, 4294901760
    %591 = vmatpush1.msra.mxu0 %v590
    %v592 = vand.u32 %v118, 4294901760
    %v593 = vsub.f32 %v118, %v592
    %v594 = vand.u32 %v593, 4294901760
    %v595 = vsub.f32 %v593, %v594
    %v596 = vand.u32 %v595, 4294901760
    %597 = vmatprep.subr.mxu0 %v596
    %v598 = vand.u32 %v117, 4294901760
    %v599 = vsub.f32 %v117, %v598
    %v600 = vand.u32 %v599, 4294901760
    %v601 = vsub.f32 %v599, %v600
    %v602 = vand.u32 %v601, 4294901760
    %603 = vmatpush1.msra.mxu0 %v602
    %v604 = vand.u32 %v120, 4294901760
    %v605 = vsub.f32 %v120, %v604
    %v606 = vand.u32 %v605, 4294901760
    %v607 = vsub.f32 %v605, %v606
    %v608 = vand.u32 %v607, 4294901760
    %609 = vmatprep.subr.mxu0 %v608
    %v610 = vand.u32 %v119, 4294901760
    %v611 = vsub.f32 %v119, %v610
    %v612 = vand.u32 %v611, 4294901760
    %v613 = vsub.f32 %v611, %v612
    %v614 = vand.u32 %v613, 4294901760
    %615 = vmatpush1.msra.mxu0 %v614
    %v616 = vand.u32 %v122, 4294901760
    %v617 = vsub.f32 %v122, %v616
    %v618 = vand.u32 %v617, 4294901760
    %v619 = vsub.f32 %v617, %v618
    %v620 = vand.u32 %v619, 4294901760
    %621 = vmatprep.subr.mxu0 %v620
    %v622 = vand.u32 %v121, 4294901760
    %v623 = vsub.f32 %v121, %v622
    %v624 = vand.u32 %v623, 4294901760
    %v625 = vsub.f32 %v623, %v624
    %v626 = vand.u32 %v625, 4294901760
    %627 = vmatpush1.msra.mxu0 %v626
    %v628 = vand.u32 %v124, 4294901760
    %v629 = vsub.f32 %v124, %v628
    %v630 = vand.u32 %v629, 4294901760
    %v631 = vsub.f32 %v629, %v630
    %v632 = vand.u32 %v631, 4294901760
    %633 = vmatprep.subr.mxu0 %v632
    %v634 = vand.u32 %v123, 4294901760
    %v635 = vsub.f32 %v123, %v634
    %v636 = vand.u32 %v635, 4294901760
    %v637 = vsub.f32 %v635, %v636
    %v638 = vand.u32 %v637, 4294901760
    %639 = vmatpush1.msra.mxu0 %v638
    %v640 = vand.u32 %v126, 4294901760
    %v641 = vsub.f32 %v126, %v640
    %v642 = vand.u32 %v641, 4294901760
    %v643 = vsub.f32 %v641, %v642
    %v644 = vand.u32 %v643, 4294901760
    %645 = vmatprep.subr.mxu0 %v644
    %v646 = vand.u32 %v125, 4294901760
    %v647 = vsub.f32 %v125, %v646
    %v648 = vand.u32 %v647, 4294901760
    %v649 = vsub.f32 %v647, %v648
    %v650 = vand.u32 %v649, 4294901760
    %651 = vmatpush1.msra.mxu0 %v650
    %v652 = vand.u32 %v128, 4294901760
    %v653 = vsub.f32 %v128, %v652
    %v654 = vand.u32 %v653, 4294901760
    %v655 = vsub.f32 %v653, %v654
    %v656 = vand.u32 %v655, 4294901760
    %657 = vmatprep.subr.mxu0 %v656
    %v658 = vand.u32 %v127, 4294901760
    %v659 = vsub.f32 %v127, %v658
    %v660 = vand.u32 %v659, 4294901760
    %v661 = vsub.f32 %v659, %v660
    %v662 = vand.u32 %v661, 4294901760
    %663 = vmatpush1.msra.mxu0 %v662
    %v664 = vand.u32 %v130, 4294901760
    %v665 = vsub.f32 %v130, %v664
    %v666 = vand.u32 %v665, 4294901760
    %v667 = vsub.f32 %v665, %v666
    %v668 = vand.u32 %v667, 4294901760
    %669 = vmatprep.subr.mxu0 %v668
    %v670 = vand.u32 %v129, 4294901760
    %v671 = vsub.f32 %v129, %v670
    %v672 = vand.u32 %v671, 4294901760
    %v673 = vsub.f32 %v671, %v672
    %v674 = vand.u32 %v673, 4294901760
    %675 = vmatpush1.msra.mxu0 %v674
    %v676 = vand.u32 %v132, 4294901760
    %v677 = vsub.f32 %v132, %v676
    %v678 = vand.u32 %v677, 4294901760
    %v679 = vsub.f32 %v677, %v678
    %v680 = vand.u32 %v679, 4294901760
    %681 = vmatprep.subr.mxu0 %v680
    %v682 = vand.u32 %v131, 4294901760
    %v683 = vsub.f32 %v131, %v682
    %v684 = vand.u32 %v683, 4294901760
    %v685 = vsub.f32 %v683, %v684
    %v686 = vand.u32 %v685, 4294901760
    %687 = vmatpush1.msra.mxu0 %v686
    %v688 = vand.u32 %v134, 4294901760
    %v689 = vsub.f32 %v134, %v688
    %v690 = vand.u32 %v689, 4294901760
    %v691 = vsub.f32 %v689, %v690
    %v692 = vand.u32 %v691, 4294901760
    %693 = vmatprep.subr.mxu0 %v692
    %v694 = vand.u32 %v133, 4294901760
    %v695 = vsub.f32 %v133, %v694
    %v696 = vand.u32 %v695, 4294901760
    %v697 = vsub.f32 %v695, %v696
    %v698 = vand.u32 %v697, 4294901760
    %699 = vmatpush1.msra.mxu0 %v698
    %v700 = vand.u32 %v168, 4294901760
    %701 = vmatprep.mubr.f32.mxu0 %v700
    %v702 = vand.u32 %v167, 4294901760
    %703 = vmatmul.mubr.f32.gmra.mrb[0].mxu0 %v702
    %v704 = vpop.f32.mrb[0].mxu0
    %v705 = vadd.f32 %v312, %v704
    %v706 = vpop.f32.mrb[0].mxu0
    %v707 = vadd.f32 %v314, %v706
    %708 = vdwg.mxu0
    %v709 = vand.u32 %v72, 4294901760
    %v710 = vsub.f32 %v72, %v709
    %711 = vmatprep.subr.mxu0 %v710
    %v712 = vand.u32 %v71, 4294901760
    %v713 = vsub.f32 %v71, %v712
    %714 = vmatpush1.msra.mxu0 %v713
    %v715 = vand.u32 %v74, 4294901760
    %v716 = vsub.f32 %v74, %v715
    %717 = vmatprep.subr.mxu0 %v716
    %v718 = vand.u32 %v73, 4294901760
    %v719 = vsub.f32 %v73, %v718
    %720 = vmatpush1.msra.mxu0 %v719
    %v721 = vand.u32 %v76, 4294901760
    %v722 = vsub.f32 %v76, %v721
    %723 = vmatprep.subr.mxu0 %v722
    %v724 = vand.u32 %v75, 4294901760
    %v725 = vsub.f32 %v75, %v724
    %726 = vmatpush1.msra.mxu0 %v725
    %v727 = vand.u32 %v78, 4294901760
    %v728 = vsub.f32 %v78, %v727
    %729 = vmatprep.subr.mxu0 %v728
    %v730 = vand.u32 %v77, 4294901760
    %v731 = vsub.f32 %v77, %v730
    %732 = vmatpush1.msra.mxu0 %v731
    %v733 = vand.u32 %v80, 4294901760
    %v734 = vsub.f32 %v80, %v733
    %735 = vmatprep.subr.mxu0 %v734
    %v736 = vand.u32 %v79, 4294901760
    %v737 = vsub.f32 %v79, %v736
    %738 = vmatpush1.msra.mxu0 %v737
    %v739 = vand.u32 %v82, 4294901760
    %v740 = vsub.f32 %v82, %v739
    %741 = vmatprep.subr.mxu0 %v740
    %v742 = vand.u32 %v81, 4294901760
    %v743 = vsub.f32 %v81, %v742
    %744 = vmatpush1.msra.mxu0 %v743
    %v745 = vand.u32 %v84, 4294901760
    %v746 = vsub.f32 %v84, %v745
    %747 = vmatprep.subr.mxu0 %v746
    %v748 = vand.u32 %v83, 4294901760
    %v749 = vsub.f32 %v83, %v748
    %750 = vmatpush1.msra.mxu0 %v749
    %v751 = vand.u32 %v86, 4294901760
    %v752 = vsub.f32 %v86, %v751
    %753 = vmatprep.subr.mxu0 %v752
    %v754 = vand.u32 %v85, 4294901760
    %v755 = vsub.f32 %v85, %v754
    %756 = vmatpush1.msra.mxu0 %v755
    %v757 = vand.u32 %v88, 4294901760
    %v758 = vsub.f32 %v88, %v757
    %759 = vmatprep.subr.mxu0 %v758
    %v760 = vand.u32 %v87, 4294901760
    %v761 = vsub.f32 %v87, %v760
    %762 = vmatpush1.msra.mxu0 %v761
    %v763 = vand.u32 %v90, 4294901760
    %v764 = vsub.f32 %v90, %v763
    %765 = vmatprep.subr.mxu0 %v764
    %v766 = vand.u32 %v89, 4294901760
    %v767 = vsub.f32 %v89, %v766
    %768 = vmatpush1.msra.mxu0 %v767
    %v769 = vand.u32 %v92, 4294901760
    %v770 = vsub.f32 %v92, %v769
    %771 = vmatprep.subr.mxu0 %v770
    %v772 = vand.u32 %v91, 4294901760
    %v773 = vsub.f32 %v91, %v772
    %774 = vmatpush1.msra.mxu0 %v773
    %v775 = vand.u32 %v94, 4294901760
    %v776 = vsub.f32 %v94, %v775
    %777 = vmatprep.subr.mxu0 %v776
    %v778 = vand.u32 %v93, 4294901760
    %v779 = vsub.f32 %v93, %v778
    %780 = vmatpush1.msra.mxu0 %v779
    %v781 = vand.u32 %v96, 4294901760
    %v782 = vsub.f32 %v96, %v781
    %783 = vmatprep.subr.mxu0 %v782
    %v784 = vand.u32 %v95, 4294901760
    %v785 = vsub.f32 %v95, %v784
    %786 = vmatpush1.msra.mxu0 %v785
    %v787 = vand.u32 %v98, 4294901760
    %v788 = vsub.f32 %v98, %v787
    %789 = vmatprep.subr.mxu0 %v788
    %v790 = vand.u32 %v97, 4294901760
    %v791 = vsub.f32 %v97, %v790
    %792 = vmatpush1.msra.mxu0 %v791
    %v793 = vand.u32 %v100, 4294901760
    %v794 = vsub.f32 %v100, %v793
    %795 = vmatprep.subr.mxu0 %v794
    %v796 = vand.u32 %v99, 4294901760
    %v797 = vsub.f32 %v99, %v796
    %798 = vmatpush1.msra.mxu0 %v797
    %v799 = vand.u32 %v102, 4294901760
    %v800 = vsub.f32 %v102, %v799
    %801 = vmatprep.subr.mxu0 %v800
    %v802 = vand.u32 %v101, 4294901760
    %v803 = vsub.f32 %v101, %v802
    %804 = vmatpush1.msra.mxu0 %v803
    %v805 = vand.u32 %v104, 4294901760
    %v806 = vsub.f32 %v104, %v805
    %807 = vmatprep.subr.mxu0 %v806
    %v808 = vand.u32 %v103, 4294901760
    %v809 = vsub.f32 %v103, %v808
    %810 = vmatpush1.msra.mxu0 %v809
    %v811 = vand.u32 %v106, 4294901760
    %v812 = vsub.f32 %v106, %v811
    %813 = vmatprep.subr.mxu0 %v812
    %v814 = vand.u32 %v105, 4294901760
    %v815 = vsub.f32 %v105, %v814
    %816 = vmatpush1.msra.mxu0 %v815
    %v817 = vand.u32 %v108, 4294901760
    %v818 = vsub.f32 %v108, %v817
    %819 = vmatprep.subr.mxu0 %v818
    %v820 = vand.u32 %v107, 4294901760
    %v821 = vsub.f32 %v107, %v820
    %822 = vmatpush1.msra.mxu0 %v821
    %v823 = vand.u32 %v110, 4294901760
    %v824 = vsub.f32 %v110, %v823
    %825 = vmatprep.subr.mxu0 %v824
    %v826 = vand.u32 %v109, 4294901760
    %v827 = vsub.f32 %v109, %v826
    %828 = vmatpush1.msra.mxu0 %v827
    %v829 = vand.u32 %v112, 4294901760
    %v830 = vsub.f32 %v112, %v829
    %831 = vmatprep.subr.mxu0 %v830
    %v832 = vand.u32 %v111, 4294901760
    %v833 = vsub.f32 %v111, %v832
    %834 = vmatpush1.msra.mxu0 %v833
    %v835 = vand.u32 %v114, 4294901760
    %v836 = vsub.f32 %v114, %v835
    %837 = vmatprep.subr.mxu0 %v836
    %v838 = vand.u32 %v113, 4294901760
    %v839 = vsub.f32 %v113, %v838
    %840 = vmatpush1.msra.mxu0 %v839
    %v841 = vand.u32 %v116, 4294901760
    %v842 = vsub.f32 %v116, %v841
    %843 = vmatprep.subr.mxu0 %v842
    %v844 = vand.u32 %v115, 4294901760
    %v845 = vsub.f32 %v115, %v844
    %846 = vmatpush1.msra.mxu0 %v845
    %v847 = vand.u32 %v118, 4294901760
    %v848 = vsub.f32 %v118, %v847
    %849 = vmatprep.subr.mxu0 %v848
    %v850 = vand.u32 %v117, 4294901760
    %v851 = vsub.f32 %v117, %v850
    %852 = vmatpush1.msra.mxu0 %v851
    %v853 = vand.u32 %v120, 4294901760
    %v854 = vsub.f32 %v120, %v853
    %855 = vmatprep.subr.mxu0 %v854
    %v856 = vand.u32 %v119, 4294901760
    %v857 = vsub.f32 %v119, %v856
    %858 = vmatpush1.msra.mxu0 %v857
    %v859 = vand.u32 %v122, 4294901760
    %v860 = vsub.f32 %v122, %v859
    %861 = vmatprep.subr.mxu0 %v860
    %v862 = vand.u32 %v121, 4294901760
    %v863 = vsub.f32 %v121, %v862
    %864 = vmatpush1.msra.mxu0 %v863
    %v865 = vand.u32 %v124, 4294901760
    %v866 = vsub.f32 %v124, %v865
    %867 = vmatprep.subr.mxu0 %v866
    %v868 = vand.u32 %v123, 4294901760
    %v869 = vsub.f32 %v123, %v868
    %870 = vmatpush1.msra.mxu0 %v869
    %v871 = vand.u32 %v126, 4294901760
    %v872 = vsub.f32 %v126, %v871
    %873 = vmatprep.subr.mxu0 %v872
    %v874 = vand.u32 %v125, 4294901760
    %v875 = vsub.f32 %v125, %v874
    %876 = vmatpush1.msra.mxu0 %v875
    %v877 = vand.u32 %v128, 4294901760
    %v878 = vsub.f32 %v128, %v877
    %879 = vmatprep.subr.mxu0 %v878
    %v880 = vand.u32 %v127, 4294901760
    %v881 = vsub.f32 %v127, %v880
    %882 = vmatpush1.msra.mxu0 %v881
    %v883 = vand.u32 %v130, 4294901760
    %v884 = vsub.f32 %v130, %v883
    %885 = vmatprep.subr.mxu0 %v884
    %v886 = vand.u32 %v129, 4294901760
    %v887 = vsub.f32 %v129, %v886
    %888 = vmatpush1.msra.mxu0 %v887
    %v889 = vand.u32 %v132, 4294901760
    %v890 = vsub.f32 %v132, %v889
    %891 = vmatprep.subr.mxu0 %v890
    %v892 = vand.u32 %v131, 4294901760
    %v893 = vsub.f32 %v131, %v892
    %894 = vmatpush1.msra.mxu0 %v893
    %v895 = vand.u32 %v134, 4294901760
    %v896 = vsub.f32 %v134, %v895
    %897 = vmatprep.subr.mxu0 %v896
    %v898 = vand.u32 %v133, 4294901760
    %v899 = vsub.f32 %v133, %v898
    %900 = vmatpush1.msra.mxu0 %v899
    %v901 = vand.u32 %v168, 4294901760
    %v902 = vsub.f32 %v168, %v901
    %903 = vmatprep.mubr.f32.mxu0 %v902
    %v904 = vand.u32 %v167, 4294901760
    %v905 = vsub.f32 %v167, %v904
    %906 = vmatmul.mubr.f32.gmra.mrb[0].mxu0 %v905
    %v907 = vpop.f32.mrb[0].mxu0
    %v908 = vadd.f32 %v705, %v907
    %v909 = vpop.f32.mrb[0].mxu0
    %v910 = vadd.f32 %v707, %v909
    %911 = vdwg.mxu0
    %v912 = vand.u32 %v72, 4294901760
    %913 = vmatprep.subr.mxu0 %v912
    %v914 = vand.u32 %v71, 4294901760
    %915 = vmatpush1.msra.mxu0 %v914
    %v916 = vand.u32 %v74, 4294901760
    %917 = vmatprep.subr.mxu0 %v916
    %v918 = vand.u32 %v73, 4294901760
    %919 = vmatpush1.msra.mxu0 %v918
    %v920 = vand.u32 %v76, 4294901760
    %921 = vmatprep.subr.mxu0 %v920
    %v922 = vand.u32 %v75, 4294901760
    %923 = vmatpush1.msra.mxu0 %v922
    %v924 = vand.u32 %v78, 4294901760
    %925 = vmatprep.subr.mxu0 %v924
    %v926 = vand.u32 %v77, 4294901760
    %927 = vmatpush1.msra.mxu0 %v926
    %v928 = vand.u32 %v80, 4294901760
    %929 = vmatprep.subr.mxu0 %v928
    %v930 = vand.u32 %v79, 4294901760
    %931 = vmatpush1.msra.mxu0 %v930
    %v932 = vand.u32 %v82, 4294901760
    %933 = vmatprep.subr.mxu0 %v932
    %v934 = vand.u32 %v81, 4294901760
    %935 = vmatpush1.msra.mxu0 %v934
    %v936 = vand.u32 %v84, 4294901760
    %937 = vmatprep.subr.mxu0 %v936
    %v938 = vand.u32 %v83, 4294901760
    %939 = vmatpush1.msra.mxu0 %v938
    %v940 = vand.u32 %v86, 4294901760
    %941 = vmatprep.subr.mxu0 %v940
    %v942 = vand.u32 %v85, 4294901760
    %943 = vmatpush1.msra.mxu0 %v942
    %v944 = vand.u32 %v88, 4294901760
    %945 = vmatprep.subr.mxu0 %v944
    %v946 = vand.u32 %v87, 4294901760
    %947 = vmatpush1.msra.mxu0 %v946
    %v948 = vand.u32 %v90, 4294901760
    %949 = vmatprep.subr.mxu0 %v948
    %v950 = vand.u32 %v89, 4294901760
    %951 = vmatpush1.msra.mxu0 %v950
    %v952 = vand.u32 %v92, 4294901760
    %953 = vmatprep.subr.mxu0 %v952
    %v954 = vand.u32 %v91, 4294901760
    %955 = vmatpush1.msra.mxu0 %v954
    %v956 = vand.u32 %v94, 4294901760
    %957 = vmatprep.subr.mxu0 %v956
    %v958 = vand.u32 %v93, 4294901760
    %959 = vmatpush1.msra.mxu0 %v958
    %v960 = vand.u32 %v96, 4294901760
    %961 = vmatprep.subr.mxu0 %v960
    %v962 = vand.u32 %v95, 4294901760
    %963 = vmatpush1.msra.mxu0 %v962
    %v964 = vand.u32 %v98, 4294901760
    %965 = vmatprep.subr.mxu0 %v964
    %v966 = vand.u32 %v97, 4294901760
    %967 = vmatpush1.msra.mxu0 %v966
    %v968 = vand.u32 %v100, 4294901760
    %969 = vmatprep.subr.mxu0 %v968
    %v970 = vand.u32 %v99, 4294901760
    %971 = vmatpush1.msra.mxu0 %v970
    %v972 = vand.u32 %v102, 4294901760
    %973 = vmatprep.subr.mxu0 %v972
    %v974 = vand.u32 %v101, 4294901760
    %975 = vmatpush1.msra.mxu0 %v974
    %v976 = vand.u32 %v104, 4294901760
    %977 = vmatprep.subr.mxu0 %v976
    %v978 = vand.u32 %v103, 4294901760
    %979 = vmatpush1.msra.mxu0 %v978
    %v980 = vand.u32 %v106, 4294901760
    %981 = vmatprep.subr.mxu0 %v980
    %v982 = vand.u32 %v105, 4294901760
    %983 = vmatpush1.msra.mxu0 %v982
    %v984 = vand.u32 %v108, 4294901760
    %985 = vmatprep.subr.mxu0 %v984
    %v986 = vand.u32 %v107, 4294901760
    %987 = vmatpush1.msra.mxu0 %v986
    %v988 = vand.u32 %v110, 4294901760
    %989 = vmatprep.subr.mxu0 %v988
    %v990 = vand.u32 %v109, 4294901760
    %991 = vmatpush1.msra.mxu0 %v990
    %v992 = vand.u32 %v112, 4294901760
    %993 = vmatprep.subr.mxu0 %v992
    %v994 = vand.u32 %v111, 4294901760
    %995 = vmatpush1.msra.mxu0 %v994
    %v996 = vand.u32 %v114, 4294901760
    %997 = vmatprep.subr.mxu0 %v996
    %v998 = vand.u32 %v113, 4294901760
    %999 = vmatpush1.msra.mxu0 %v998
    %v1000 = vand.u32 %v116, 4294901760
    %1001 = vmatprep.subr.mxu0 %v1000
    %v1002 = vand.u32 %v115, 4294901760
    %1003 = vmatpush1.msra.mxu0 %v1002
    %v1004 = vand.u32 %v118, 4294901760
    %1005 = vmatprep.subr.mxu0 %v1004
    %v1006 = vand.u32 %v117, 4294901760
    %1007 = vmatpush1.msra.mxu0 %v1006
    %v1008 = vand.u32 %v120, 4294901760
    %1009 = vmatprep.subr.mxu0 %v1008
    %v1010 = vand.u32 %v119, 4294901760
    %1011 = vmatpush1.msra.mxu0 %v1010
    %v1012 = vand.u32 %v122, 4294901760
    %1013 = vmatprep.subr.mxu0 %v1012
    %v1014 = vand.u32 %v121, 4294901760
    %1015 = vmatpush1.msra.mxu0 %v1014
    %v1016 = vand.u32 %v124, 4294901760
    %1017 = vmatprep.subr.mxu0 %v1016
    %v1018 = vand.u32 %v123, 4294901760
    %1019 = vmatpush1.msra.mxu0 %v1018
    %v1020 = vand.u32 %v126, 4294901760
    %1021 = vmatprep.subr.mxu0 %v1020
    %v1022 = vand.u32 %v125, 4294901760
    %1023 = vmatpush1.msra.mxu0 %v1022
    %v1024 = vand.u32 %v128, 4294901760
    %1025 = vmatprep.subr.mxu0 %v1024
    %v1026 = vand.u32 %v127, 4294901760
    %1027 = vmatpush1.msra.mxu0 %v1026
    %v1028 = vand.u32 %v130, 4294901760
    %1029 = vmatprep.subr.mxu0 %v1028
    %v1030 = vand.u32 %v129, 4294901760
    %1031 = vmatpush1.msra.mxu0 %v1030
    %v1032 = vand.u32 %v132, 4294901760
    %1033 = vmatprep.subr.mxu0 %v1032
    %v1034 = vand.u32 %v131, 4294901760
    %1035 = vmatpush1.msra.mxu0 %v1034
    %v1036 = vand.u32 %v134, 4294901760
    %1037 = vmatprep.subr.mxu0 %v1036
    %v1038 = vand.u32 %v133, 4294901760
    %1039 = vmatpush1.msra.mxu0 %v1038
    %v1040 = vand.u32 %v168, 4294901760
    %v1041 = vsub.f32 %v168, %v1040
    %v1042 = vand.u32 %v1041, 4294901760
    %1043 = vmatprep.mubr.f32.mxu0 %v1042
    %v1044 = vand.u32 %v167, 4294901760
    %v1045 = vsub.f32 %v167, %v1044
    %v1046 = vand.u32 %v1045, 4294901760
    %1047 = vmatmul.mubr.f32.gmra.mrb[0].mxu0 %v1046
    %v1048 = vpop.f32.mrb[0].mxu0
    %v1049 = vadd.f32 %v908, %v1048
    %v1050 = vpop.f32.mrb[0].mxu0
    %v1051 = vadd.f32 %v910, %v1050
    %1052 = vdwg.mxu0
    %v1053 = vand.u32 %v72, 4294901760
    %v1054 = vsub.f32 %v72, %v1053
    %v1055 = vand.u32 %v1054, 4294901760
    %1056 = vmatprep.subr.mxu0 %v1055
    %v1057 = vand.u32 %v71, 4294901760
    %v1058 = vsub.f32 %v71, %v1057
    %v1059 = vand.u32 %v1058, 4294901760
    %1060 = vmatpush1.msra.mxu0 %v1059
    %v1061 = vand.u32 %v74, 4294901760
    %v1062 = vsub.f32 %v74, %v1061
    %v1063 = vand.u32 %v1062, 4294901760
    %1064 = vmatprep.subr.mxu0 %v1063
    %v1065 = vand.u32 %v73, 4294901760
    %v1066 = vsub.f32 %v73, %v1065
    %v1067 = vand.u32 %v1066, 4294901760
    %1068 = vmatpush1.msra.mxu0 %v1067
    %v1069 = vand.u32 %v76, 4294901760
    %v1070 = vsub.f32 %v76, %v1069
    %v1071 = vand.u32 %v1070, 4294901760
    %1072 = vmatprep.subr.mxu0 %v1071
    %v1073 = vand.u32 %v75, 4294901760
    %v1074 = vsub.f32 %v75, %v1073
    %v1075 = vand.u32 %v1074, 4294901760
    %1076 = vmatpush1.msra.mxu0 %v1075
    %v1077 = vand.u32 %v78, 4294901760
    %v1078 = vsub.f32 %v78, %v1077
    %v1079 = vand.u32 %v1078, 4294901760
    %1080 = vmatprep.subr.mxu0 %v1079
    %v1081 = vand.u32 %v77, 4294901760
    %v1082 = vsub.f32 %v77, %v1081
    %v1083 = vand.u32 %v1082, 4294901760
    %1084 = vmatpush1.msra.mxu0 %v1083
    %v1085 = vand.u32 %v80, 4294901760
    %v1086 = vsub.f32 %v80, %v1085
    %v1087 = vand.u32 %v1086, 4294901760
    %1088 = vmatprep.subr.mxu0 %v1087
    %v1089 = vand.u32 %v79, 4294901760
    %v1090 = vsub.f32 %v79, %v1089
    %v1091 = vand.u32 %v1090, 4294901760
    %1092 = vmatpush1.msra.mxu0 %v1091
    %v1093 = vand.u32 %v82, 4294901760
    %v1094 = vsub.f32 %v82, %v1093
    %v1095 = vand.u32 %v1094, 4294901760
    %1096 = vmatprep.subr.mxu0 %v1095
    %v1097 = vand.u32 %v81, 4294901760
    %v1098 = vsub.f32 %v81, %v1097
    %v1099 = vand.u32 %v1098, 4294901760
    %1100 = vmatpush1.msra.mxu0 %v1099
    %v1101 = vand.u32 %v84, 4294901760
    %v1102 = vsub.f32 %v84, %v1101
    %v1103 = vand.u32 %v1102, 4294901760
    %1104 = vmatprep.subr.mxu0 %v1103
    %v1105 = vand.u32 %v83, 4294901760
    %v1106 = vsub.f32 %v83, %v1105
    %v1107 = vand.u32 %v1106, 4294901760
    %1108 = vmatpush1.msra.mxu0 %v1107
    %v1109 = vand.u32 %v86, 4294901760
    %v1110 = vsub.f32 %v86, %v1109
    %v1111 = vand.u32 %v1110, 4294901760
    %1112 = vmatprep.subr.mxu0 %v1111
    %v1113 = vand.u32 %v85, 4294901760
    %v1114 = vsub.f32 %v85, %v1113
    %v1115 = vand.u32 %v1114, 4294901760
    %1116 = vmatpush1.msra.mxu0 %v1115
    %v1117 = vand.u32 %v88, 4294901760
    %v1118 = vsub.f32 %v88, %v1117
    %v1119 = vand.u32 %v1118, 4294901760
    %1120 = vmatprep.subr.mxu0 %v1119
    %v1121 = vand.u32 %v87, 4294901760
    %v1122 = vsub.f32 %v87, %v1121
    %v1123 = vand.u32 %v1122, 4294901760
    %1124 = vmatpush1.msra.mxu0 %v1123
    %v1125 = vand.u32 %v90, 4294901760
    %v1126 = vsub.f32 %v90, %v1125
    %v1127 = vand.u32 %v1126, 4294901760
    %1128 = vmatprep.subr.mxu0 %v1127
    %v1129 = vand.u32 %v89, 4294901760
    %v1130 = vsub.f32 %v89, %v1129
    %v1131 = vand.u32 %v1130, 4294901760
    %1132 = vmatpush1.msra.mxu0 %v1131
    %v1133 = vand.u32 %v92, 4294901760
    %v1134 = vsub.f32 %v92, %v1133
    %v1135 = vand.u32 %v1134, 4294901760
    %1136 = vmatprep.subr.mxu0 %v1135
    %v1137 = vand.u32 %v91, 4294901760
    %v1138 = vsub.f32 %v91, %v1137
    %v1139 = vand.u32 %v1138, 4294901760
    %1140 = vmatpush1.msra.mxu0 %v1139
    %v1141 = vand.u32 %v94, 4294901760
    %v1142 = vsub.f32 %v94, %v1141
    %v1143 = vand.u32 %v1142, 4294901760
    %1144 = vmatprep.subr.mxu0 %v1143
    %v1145 = vand.u32 %v93, 4294901760
    %v1146 = vsub.f32 %v93, %v1145
    %v1147 = vand.u32 %v1146, 4294901760
    %1148 = vmatpush1.msra.mxu0 %v1147
    %v1149 = vand.u32 %v96, 4294901760
    %v1150 = vsub.f32 %v96, %v1149
    %v1151 = vand.u32 %v1150, 4294901760
    %1152 = vmatprep.subr.mxu0 %v1151
    %v1153 = vand.u32 %v95, 4294901760
    %v1154 = vsub.f32 %v95, %v1153
    %v1155 = vand.u32 %v1154, 4294901760
    %1156 = vmatpush1.msra.mxu0 %v1155
    %v1157 = vand.u32 %v98, 4294901760
    %v1158 = vsub.f32 %v98, %v1157
    %v1159 = vand.u32 %v1158, 4294901760
    %1160 = vmatprep.subr.mxu0 %v1159
    %v1161 = vand.u32 %v97, 4294901760
    %v1162 = vsub.f32 %v97, %v1161
    %v1163 = vand.u32 %v1162, 4294901760
    %1164 = vmatpush1.msra.mxu0 %v1163
    %v1165 = vand.u32 %v100, 4294901760
    %v1166 = vsub.f32 %v100, %v1165
    %v1167 = vand.u32 %v1166, 4294901760
    %1168 = vmatprep.subr.mxu0 %v1167
    %v1169 = vand.u32 %v99, 4294901760
    %v1170 = vsub.f32 %v99, %v1169
    %v1171 = vand.u32 %v1170, 4294901760
    %1172 = vmatpush1.msra.mxu0 %v1171
    %v1173 = vand.u32 %v102, 4294901760
    %v1174 = vsub.f32 %v102, %v1173
    %v1175 = vand.u32 %v1174, 4294901760
    %1176 = vmatprep.subr.mxu0 %v1175
    %v1177 = vand.u32 %v101, 4294901760
    %v1178 = vsub.f32 %v101, %v1177
    %v1179 = vand.u32 %v1178, 4294901760
    %1180 = vmatpush1.msra.mxu0 %v1179
    %v1181 = vand.u32 %v104, 4294901760
    %v1182 = vsub.f32 %v104, %v1181
    %v1183 = vand.u32 %v1182, 4294901760
    %1184 = vmatprep.subr.mxu0 %v1183
    %v1185 = vand.u32 %v103, 4294901760
    %v1186 = vsub.f32 %v103, %v1185
    %v1187 = vand.u32 %v1186, 4294901760
    %1188 = vmatpush1.msra.mxu0 %v1187
    %v1189 = vand.u32 %v106, 4294901760
    %v1190 = vsub.f32 %v106, %v1189
    %v1191 = vand.u32 %v1190, 4294901760
    %1192 = vmatprep.subr.mxu0 %v1191
    %v1193 = vand.u32 %v105, 4294901760
    %v1194 = vsub.f32 %v105, %v1193
    %v1195 = vand.u32 %v1194, 4294901760
    %1196 = vmatpush1.msra.mxu0 %v1195
    %v1197 = vand.u32 %v108, 4294901760
    %v1198 = vsub.f32 %v108, %v1197
    %v1199 = vand.u32 %v1198, 4294901760
    %1200 = vmatprep.subr.mxu0 %v1199
    %v1201 = vand.u32 %v107, 4294901760
    %v1202 = vsub.f32 %v107, %v1201
    %v1203 = vand.u32 %v1202, 4294901760
    %1204 = vmatpush1.msra.mxu0 %v1203
    %v1205 = vand.u32 %v110, 4294901760
    %v1206 = vsub.f32 %v110, %v1205
    %v1207 = vand.u32 %v1206, 4294901760
    %1208 = vmatprep.subr.mxu0 %v1207
    %v1209 = vand.u32 %v109, 4294901760
    %v1210 = vsub.f32 %v109, %v1209
    %v1211 = vand.u32 %v1210, 4294901760
    %1212 = vmatpush1.msra.mxu0 %v1211
    %v1213 = vand.u32 %v112, 4294901760
    %v1214 = vsub.f32 %v112, %v1213
    %v1215 = vand.u32 %v1214, 4294901760
    %1216 = vmatprep.subr.mxu0 %v1215
    %v1217 = vand.u32 %v111, 4294901760
    %v1218 = vsub.f32 %v111, %v1217
    %v1219 = vand.u32 %v1218, 4294901760
    %1220 = vmatpush1.msra.mxu0 %v1219
    %v1221 = vand.u32 %v114, 4294901760
    %v1222 = vsub.f32 %v114, %v1221
    %v1223 = vand.u32 %v1222, 4294901760
    %1224 = vmatprep.subr.mxu0 %v1223
    %v1225 = vand.u32 %v113, 4294901760
    %v1226 = vsub.f32 %v113, %v1225
    %v1227 = vand.u32 %v1226, 4294901760
    %1228 = vmatpush1.msra.mxu0 %v1227
    %v1229 = vand.u32 %v116, 4294901760
    %v1230 = vsub.f32 %v116, %v1229
    %v1231 = vand.u32 %v1230, 4294901760
    %1232 = vmatprep.subr.mxu0 %v1231
    %v1233 = vand.u32 %v115, 4294901760
    %v1234 = vsub.f32 %v115, %v1233
    %v1235 = vand.u32 %v1234, 4294901760
    %1236 = vmatpush1.msra.mxu0 %v1235
    %v1237 = vand.u32 %v118, 4294901760
    %v1238 = vsub.f32 %v118, %v1237
    %v1239 = vand.u32 %v1238, 4294901760
    %1240 = vmatprep.subr.mxu0 %v1239
    %v1241 = vand.u32 %v117, 4294901760
    %v1242 = vsub.f32 %v117, %v1241
    %v1243 = vand.u32 %v1242, 4294901760
    %1244 = vmatpush1.msra.mxu0 %v1243
    %v1245 = vand.u32 %v120, 4294901760
    %v1246 = vsub.f32 %v120, %v1245
    %v1247 = vand.u32 %v1246, 4294901760
    %1248 = vmatprep.subr.mxu0 %v1247
    %v1249 = vand.u32 %v119, 4294901760
    %v1250 = vsub.f32 %v119, %v1249
    %v1251 = vand.u32 %v1250, 4294901760
    %1252 = vmatpush1.msra.mxu0 %v1251
    %v1253 = vand.u32 %v122, 4294901760
    %v1254 = vsub.f32 %v122, %v1253
    %v1255 = vand.u32 %v1254, 4294901760
    %1256 = vmatprep.subr.mxu0 %v1255
    %v1257 = vand.u32 %v121, 4294901760
    %v1258 = vsub.f32 %v121, %v1257
    %v1259 = vand.u32 %v1258, 4294901760
    %1260 = vmatpush1.msra.mxu0 %v1259
    %v1261 = vand.u32 %v124, 4294901760
    %v1262 = vsub.f32 %v124, %v1261
    %v1263 = vand.u32 %v1262, 4294901760
    %1264 = vmatprep.subr.mxu0 %v1263
    %v1265 = vand.u32 %v123, 4294901760
    %v1266 = vsub.f32 %v123, %v1265
    %v1267 = vand.u32 %v1266, 4294901760
    %1268 = vmatpush1.msra.mxu0 %v1267
    %v1269 = vand.u32 %v126, 4294901760
    %v1270 = vsub.f32 %v126, %v1269
    %v1271 = vand.u32 %v1270, 4294901760
    %1272 = vmatprep.subr.mxu0 %v1271
    %v1273 = vand.u32 %v125, 4294901760
    %v1274 = vsub.f32 %v125, %v1273
    %v1275 = vand.u32 %v1274, 4294901760
    %1276 = vmatpush1.msra.mxu0 %v1275
    %v1277 = vand.u32 %v128, 4294901760
    %v1278 = vsub.f32 %v128, %v1277
    %v1279 = vand.u32 %v1278, 4294901760
    %1280 = vmatprep.subr.mxu0 %v1279
    %v1281 = vand.u32 %v127, 4294901760
    %v1282 = vsub.f32 %v127, %v1281
    %v1283 = vand.u32 %v1282, 4294901760
    %1284 = vmatpush1.msra.mxu0 %v1283
    %v1285 = vand.u32 %v130, 4294901760
    %v1286 = vsub.f32 %v130, %v1285
    %v1287 = vand.u32 %v1286, 4294901760
    %1288 = vmatprep.subr.mxu0 %v1287
    %v1289 = vand.u32 %v129, 4294901760
    %v1290 = vsub.f32 %v129, %v1289
    %v1291 = vand.u32 %v1290, 4294901760
    %1292 = vmatpush1.msra.mxu0 %v1291
    %v1293 = vand.u32 %v132, 4294901760
    %v1294 = vsub.f32 %v132, %v1293
    %v1295 = vand.u32 %v1294, 4294901760
    %1296 = vmatprep.subr.mxu0 %v1295
    %v1297 = vand.u32 %v131, 4294901760
    %v1298 = vsub.f32 %v131, %v1297
    %v1299 = vand.u32 %v1298, 4294901760
    %1300 = vmatpush1.msra.mxu0 %v1299
    %v1301 = vand.u32 %v134, 4294901760
    %v1302 = vsub.f32 %v134, %v1301
    %v1303 = vand.u32 %v1302, 4294901760
    %1304 = vmatprep.subr.mxu0 %v1303
    %v1305 = vand.u32 %v133, 4294901760
    %v1306 = vsub.f32 %v133, %v1305
    %v1307 = vand.u32 %v1306, 4294901760
    %1308 = vmatpush1.msra.mxu0 %v1307
    %v1309 = vand.u32 %v168, 4294901760
    %1310 = vmatprep.mubr.f32.mxu0 %v1309
    %v1311 = vand.u32 %v167, 4294901760
    %1312 = vmatmul.mubr.f32.gmra.mrb[0].mxu0 %v1311
    %v1313 = vpop.f32.mrb[0].mxu0
    %v1314 = vadd.f32 %v1049, %v1313
    %v1315 = vpop.f32.mrb[0].mxu0
    %v1316 = vadd.f32 %v1051, %v1315
    %1317 = vdwg.mxu0
    %v1318 = vand.u32 %v72, 4294901760
    %1319 = vmatprep.subr.mxu0 %v1318
    %v1320 = vand.u32 %v71, 4294901760
    %1321 = vmatpush1.msra.mxu0 %v1320
    %v1322 = vand.u32 %v74, 4294901760
    %1323 = vmatprep.subr.mxu0 %v1322
    %v1324 = vand.u32 %v73, 4294901760
    %1325 = vmatpush1.msra.mxu0 %v1324
    %v1326 = vand.u32 %v76, 4294901760
    %1327 = vmatprep.subr.mxu0 %v1326
    %v1328 = vand.u32 %v75, 4294901760
    %1329 = vmatpush1.msra.mxu0 %v1328
    %v1330 = vand.u32 %v78, 4294901760
    %1331 = vmatprep.subr.mxu0 %v1330
    %v1332 = vand.u32 %v77, 4294901760
    %1333 = vmatpush1.msra.mxu0 %v1332
    %v1334 = vand.u32 %v80, 4294901760
    %1335 = vmatprep.subr.mxu0 %v1334
    %v1336 = vand.u32 %v79, 4294901760
    %1337 = vmatpush1.msra.mxu0 %v1336
    %v1338 = vand.u32 %v82, 4294901760
    %1339 = vmatprep.subr.mxu0 %v1338
    %v1340 = vand.u32 %v81, 4294901760
    %1341 = vmatpush1.msra.mxu0 %v1340
    %v1342 = vand.u32 %v84, 4294901760
    %1343 = vmatprep.subr.mxu0 %v1342
    %v1344 = vand.u32 %v83, 4294901760
    %1345 = vmatpush1.msra.mxu0 %v1344
    %v1346 = vand.u32 %v86, 4294901760
    %1347 = vmatprep.subr.mxu0 %v1346
    %v1348 = vand.u32 %v85, 4294901760
    %1349 = vmatpush1.msra.mxu0 %v1348
    %v1350 = vand.u32 %v88, 4294901760
    %1351 = vmatprep.subr.mxu0 %v1350
    %v1352 = vand.u32 %v87, 4294901760
    %1353 = vmatpush1.msra.mxu0 %v1352
    %v1354 = vand.u32 %v90, 4294901760
    %1355 = vmatprep.subr.mxu0 %v1354
    %v1356 = vand.u32 %v89, 4294901760
    %1357 = vmatpush1.msra.mxu0 %v1356
    %v1358 = vand.u32 %v92, 4294901760
    %1359 = vmatprep.subr.mxu0 %v1358
    %v1360 = vand.u32 %v91, 4294901760
    %1361 = vmatpush1.msra.mxu0 %v1360
    %v1362 = vand.u32 %v94, 4294901760
    %1363 = vmatprep.subr.mxu0 %v1362
    %v1364 = vand.u32 %v93, 4294901760
    %1365 = vmatpush1.msra.mxu0 %v1364
    %v1366 = vand.u32 %v96, 4294901760
    %1367 = vmatprep.subr.mxu0 %v1366
    %v1368 = vand.u32 %v95, 4294901760
    %1369 = vmatpush1.msra.mxu0 %v1368
    %v1370 = vand.u32 %v98, 4294901760
    %1371 = vmatprep.subr.mxu0 %v1370
    %v1372 = vand.u32 %v97, 4294901760
    %1373 = vmatpush1.msra.mxu0 %v1372
    %v1374 = vand.u32 %v100, 4294901760
    %1375 = vmatprep.subr.mxu0 %v1374
    %v1376 = vand.u32 %v99, 4294901760
    %1377 = vmatpush1.msra.mxu0 %v1376
    %v1378 = vand.u32 %v102, 4294901760
    %1379 = vmatprep.subr.mxu0 %v1378
    %v1380 = vand.u32 %v101, 4294901760
    %1381 = vmatpush1.msra.mxu0 %v1380
    %v1382 = vand.u32 %v104, 4294901760
    %1383 = vmatprep.subr.mxu0 %v1382
    %v1384 = vand.u32 %v103, 4294901760
    %1385 = vmatpush1.msra.mxu0 %v1384
    %v1386 = vand.u32 %v106, 4294901760
    %1387 = vmatprep.subr.mxu0 %v1386
    %v1388 = vand.u32 %v105, 4294901760
    %1389 = vmatpush1.msra.mxu0 %v1388
    %v1390 = vand.u32 %v108, 4294901760
    %1391 = vmatprep.subr.mxu0 %v1390
    %v1392 = vand.u32 %v107, 4294901760
    %1393 = vmatpush1.msra.mxu0 %v1392
    %v1394 = vand.u32 %v110, 4294901760
    %1395 = vmatprep.subr.mxu0 %v1394
    %v1396 = vand.u32 %v109, 4294901760
    %1397 = vmatpush1.msra.mxu0 %v1396
    %v1398 = vand.u32 %v112, 4294901760
    %1399 = vmatprep.subr.mxu0 %v1398
    %v1400 = vand.u32 %v111, 4294901760
    %1401 = vmatpush1.msra.mxu0 %v1400
    %v1402 = vand.u32 %v114, 4294901760
    %1403 = vmatprep.subr.mxu0 %v1402
    %v1404 = vand.u32 %v113, 4294901760
    %1405 = vmatpush1.msra.mxu0 %v1404
    %v1406 = vand.u32 %v116, 4294901760
    %1407 = vmatprep.subr.mxu0 %v1406
    %v1408 = vand.u32 %v115, 4294901760
    %1409 = vmatpush1.msra.mxu0 %v1408
    %v1410 = vand.u32 %v118, 4294901760
    %1411 = vmatprep.subr.mxu0 %v1410
    %v1412 = vand.u32 %v117, 4294901760
    %1413 = vmatpush1.msra.mxu0 %v1412
    %v1414 = vand.u32 %v120, 4294901760
    %1415 = vmatprep.subr.mxu0 %v1414
    %v1416 = vand.u32 %v119, 4294901760
    %1417 = vmatpush1.msra.mxu0 %v1416
    %v1418 = vand.u32 %v122, 4294901760
    %1419 = vmatprep.subr.mxu0 %v1418
    %v1420 = vand.u32 %v121, 4294901760
    %1421 = vmatpush1.msra.mxu0 %v1420
    %v1422 = vand.u32 %v124, 4294901760
    %1423 = vmatprep.subr.mxu0 %v1422
    %v1424 = vand.u32 %v123, 4294901760
    %1425 = vmatpush1.msra.mxu0 %v1424
    %v1426 = vand.u32 %v126, 4294901760
    %1427 = vmatprep.subr.mxu0 %v1426
    %v1428 = vand.u32 %v125, 4294901760
    %1429 = vmatpush1.msra.mxu0 %v1428
    %v1430 = vand.u32 %v128, 4294901760
    %1431 = vmatprep.subr.mxu0 %v1430
    %v1432 = vand.u32 %v127, 4294901760
    %1433 = vmatpush1.msra.mxu0 %v1432
    %v1434 = vand.u32 %v130, 4294901760
    %1435 = vmatprep.subr.mxu0 %v1434
    %v1436 = vand.u32 %v129, 4294901760
    %1437 = vmatpush1.msra.mxu0 %v1436
    %v1438 = vand.u32 %v132, 4294901760
    %1439 = vmatprep.subr.mxu0 %v1438
    %v1440 = vand.u32 %v131, 4294901760
    %1441 = vmatpush1.msra.mxu0 %v1440
    %v1442 = vand.u32 %v134, 4294901760
    %1443 = vmatprep.subr.mxu0 %v1442
    %v1444 = vand.u32 %v133, 4294901760
    %1445 = vmatpush1.msra.mxu0 %v1444
    %v1446 = vand.u32 %v168, 4294901760
    %1447 = vmatprep.mubr.f32.mxu0 %v1446
    %v1448 = vand.u32 %v167, 4294901760
    %1449 = vmatmul.mubr.f32.gmra.mrb[0].mxu0 %v1448
    %v1450 = vpop.f32.mrb[0].mxu0
    %v1451 = vadd.f32 %v1314, %v1450
    %v1452 = vpop.f32.mrb[0].mxu0
    %v1453 = vadd.f32 %v1316, %v1452
    %1454 = vdwg.mxu0
    %v1455 = vtanh.pop %v1451
    %v1456 = vtanh.pop %v1453
    %v1457 = vld [vmem:[#allocation8] sm:$0xff]
    %v1458 = vld [vmem:[#allocation7] sm:$0xff]
    %v1459 = vld [vmem:[#allocation7 + $0x8] sm:$0xff]
    %v1460 = vld [vmem:[#allocation7 + $0x10] sm:$0xff]
    %v1461 = vld [vmem:[#allocation7 + $0x18] sm:$0xff]
    %v1462 = vld [vmem:[#allocation7 + $0x20] sm:$0xff]
    %v1463 = vld [vmem:[#allocation7 + $0x28] sm:$0xff]
    %v1464 = vld [vmem:[#allocation7 + $0x30] sm:$0xff]
    %v1465 = vld [vmem:[#allocation7 + $0x38] sm:$0xff]
    %v1466 = vld [vmem:[#allocation7 + $0x40] sm:$0xff]
    %v1467 = vld [vmem:[#allocation7 + $0x48] sm:$0xff]
    %v1468 = vld [vmem:[#allocation7 + $0x50] sm:$0xff]
    %v1469 = vld [vmem:[#allocation7 + $0x58] sm:$0xff]
    %v1470 = vld [vmem:[#allocation7 + $0x60] sm:$0xff]
    %v1471 = vld [vmem:[#allocation7 + $0x68] sm:$0xff]
    %v1472 = vld [vmem:[#allocation7 + $0x70] sm:$0xff]
    %v1473 = vld [vmem:[#allocation7 + $0x78] sm:$0xff]
    %v1474 = vld [vmem:[#allocation7 + $0x80] sm:$0xff]
    %v1475 = vld [vmem:[#allocation7 + $0x88] sm:$0xff]
    %v1476 = vld [vmem:[#allocation7 + $0x90] sm:$0xff]
    %v1477 = vld [vmem:[#allocation7 + $0x98] sm:$0xff]
    %v1478 = vld [vmem:[#allocation7 + $0xa0] sm:$0xff]
    %v1479 = vld [vmem:[#allocation7 + $0xa8] sm:$0xff]
    %v1480 = vld [vmem:[#allocation7 + $0xb0] sm:$0xff]
    %v1481 = vld [vmem:[#allocation7 + $0xb8] sm:$0xff]
    %v1482 = vld [vmem:[#allocation7 + $0xc0] sm:$0xff]
    %v1483 = vld [vmem:[#allocation7 + $0xc8] sm:$0xff]
    %v1484 = vld [vmem:[#allocation7 + $0xd0] sm:$0xff]
    %v1485 = vld [vmem:[#allocation7 + $0xd8] sm:$0xff]
    %v1486 = vld [vmem:[#allocation7 + $0xe0] sm:$0xff]
    %v1487 = vld [vmem:[#allocation7 + $0xe8] sm:$0xff]
    %v1488 = vld [vmem:[#allocation7 + $0xf0] sm:$0xff]
    %v1489 = vld [vmem:[#allocation7 + $0xf8] sm:$0xff]
    %1490 = vmatprep.subr.mxu0 0.0
    %v1491 = vand.u32 %v1458, 4294901760
    %1492 = vmatpush1.msra.mxu0 %v1491
    %1493 = vmatprep.subr.mxu0 0.0
    %v1494 = vand.u32 %v1459, 4294901760
    %1495 = vmatpush1.msra.mxu0 %v1494
    %1496 = vmatprep.subr.mxu0 0.0
    %v1497 = vand.u32 %v1460, 4294901760
    %1498 = vmatpush1.msra.mxu0 %v1497
    %1499 = vmatprep.subr.mxu0 0.0
    %v1500 = vand.u32 %v1461, 4294901760
    %1501 = vmatpush1.msra.mxu0 %v1500
    %1502 = vmatprep.subr.mxu0 0.0
    %v1503 = vand.u32 %v1462, 4294901760
    %1504 = vmatpush1.msra.mxu0 %v1503
    %1505 = vmatprep.subr.mxu0 0.0
    %v1506 = vand.u32 %v1463, 4294901760
    %1507 = vmatpush1.msra.mxu0 %v1506
    %1508 = vmatprep.subr.mxu0 0.0
    %v1509 = vand.u32 %v1464, 4294901760
    %1510 = vmatpush1.msra.mxu0 %v1509
    %1511 = vmatprep.subr.mxu0 0.0
    %v1512 = vand.u32 %v1465, 4294901760
    %1513 = vmatpush1.msra.mxu0 %v1512
    %1514 = vmatprep.subr.mxu0 0.0
    %v1515 = vand.u32 %v1466, 4294901760
    %1516 = vmatpush1.msra.mxu0 %v1515
    %1517 = vmatprep.subr.mxu0 0.0
    %v1518 = vand.u32 %v1467, 4294901760
    %1519 = vmatpush1.msra.mxu0 %v1518
    %1520 = vmatprep.subr.mxu0 0.0
    %v1521 = vand.u32 %v1468, 4294901760
    %1522 = vmatpush1.msra.mxu0 %v1521
    %1523 = vmatprep.subr.mxu0 0.0
    %v1524 = vand.u32 %v1469, 4294901760
    %1525 = vmatpush1.msra.mxu0 %v1524
    %1526 = vmatprep.subr.mxu0 0.0
    %v1527 = vand.u32 %v1470, 4294901760
    %1528 = vmatpush1.msra.mxu0 %v1527
    %1529 = vmatprep.subr.mxu0 0.0
    %v1530 = vand.u32 %v1471, 4294901760
    %1531 = vmatpush1.msra.mxu0 %v1530
    %1532 = vmatprep.subr.mxu0 0.0
    %v1533 = vand.u32 %v1472, 4294901760
    %1534 = vmatpush1.msra.mxu0 %v1533
    %1535 = vmatprep.subr.mxu0 0.0
    %v1536 = vand.u32 %v1473, 4294901760
    %1537 = vmatpush1.msra.mxu0 %v1536
    %1538 = vmatprep.subr.mxu0 0.0
    %v1539 = vand.u32 %v1474, 4294901760
    %1540 = vmatpush1.msra.mxu0 %v1539
    %1541 = vmatprep.subr.mxu0 0.0
    %v1542 = vand.u32 %v1475, 4294901760
    %1543 = vmatpush1.msra.mxu0 %v1542
    %1544 = vmatprep.subr.mxu0 0.0
    %v1545 = vand.u32 %v1476, 4294901760
    %1546 = vmatpush1.msra.mxu0 %v1545
    %1547 = vmatprep.subr.mxu0 0.0
    %v1548 = vand.u32 %v1477, 4294901760
    %1549 = vmatpush1.msra.mxu0 %v1548
    %1550 = vmatprep.subr.mxu0 0.0
    %v1551 = vand.u32 %v1478, 4294901760
    %1552 = vmatpush1.msra.mxu0 %v1551
    %1553 = vmatprep.subr.mxu0 0.0
    %v1554 = vand.u32 %v1479, 4294901760
    %1555 = vmatpush1.msra.mxu0 %v1554
    %1556 = vmatprep.subr.mxu0 0.0
    %v1557 = vand.u32 %v1480, 4294901760
    %1558 = vmatpush1.msra.mxu0 %v1557
    %1559 = vmatprep.subr.mxu0 0.0
    %v1560 = vand.u32 %v1481, 4294901760
    %1561 = vmatpush1.msra.mxu0 %v1560
    %1562 = vmatprep.subr.mxu0 0.0
    %v1563 = vand.u32 %v1482, 4294901760
    %1564 = vmatpush1.msra.mxu0 %v1563
    %1565 = vmatprep.subr.mxu0 0.0
    %v1566 = vand.u32 %v1483, 4294901760
    %1567 = vmatpush1.msra.mxu0 %v1566
    %1568 = vmatprep.subr.mxu0 0.0
    %v1569 = vand.u32 %v1484, 4294901760
    %1570 = vmatpush1.msra.mxu0 %v1569
    %1571 = vmatprep.subr.mxu0 0.0
    %v1572 = vand.u32 %v1485, 4294901760
    %1573 = vmatpush1.msra.mxu0 %v1572
    %1574 = vmatprep.subr.mxu0 0.0
    %v1575 = vand.u32 %v1486, 4294901760
    %1576 = vmatpush1.msra.mxu0 %v1575
    %1577 = vmatprep.subr.mxu0 0.0
    %v1578 = vand.u32 %v1487, 4294901760
    %1579 = vmatpush1.msra.mxu0 %v1578
    %1580 = vmatprep.subr.mxu0 0.0
    %v1581 = vand.u32 %v1488, 4294901760
    %1582 = vmatpush1.msra.mxu0 %v1581
    %1583 = vmatprep.subr.mxu0 0.0
    %v1584 = vand.u32 %v1489, 4294901760
    %1585 = vmatpush1.msra.mxu0 %v1584
    %v1586 = vand.u32 %v1456, 4294901760
    %v1587 = vsub.f32 %v1456, %v1586
    %v1588 = vand.u32 %v1587, 4294901760
    %v1589 = vsub.f32 %v1587, %v1588
    %v1590 = vand.u32 %v1589, 4294901760
    %1591 = vmatprep.mubr.f32.mxu0 %v1590
    %v1592 = vand.u32 %v1455, 4294901760
    %v1593 = vsub.f32 %v1455, %v1592
    %v1594 = vand.u32 %v1593, 4294901760
    %v1595 = vsub.f32 %v1593, %v1594
    %v1596 = vand.u32 %v1595, 4294901760
    %1597 = vmatmul.mubr.f32.gmra.mrb[0].mxu0 %v1596
    %v1598 = vpop.f32.mrb[0].mxu0
    %v1599 = vadd.f32 0.0, %v1598
    %v1600 = vpop.f32.mrb[0].mxu0
    %1601 = vdwg.mxu0
    %1602 = vmatprep.subr.mxu0 0.0
    %v1603 = vand.u32 %v1458, 4294901760
    %v1604 = vsub.f32 %v1458, %v1603
    %v1605 = vand.u32 %v1604, 4294901760
    %v1606 = vsub.f32 %v1604, %v1605
    %v1607 = vand.u32 %v1606, 4294901760
    %1608 = vmatpush1.msra.mxu0 %v1607
    %1609 = vmatprep.subr.mxu0 0.0
    %v1610 = vand.u32 %v1459, 4294901760
    %v1611 = vsub.f32 %v1459, %v1610
    %v1612 = vand.u32 %v1611, 4294901760
    %v1613 = vsub.f32 %v1611, %v1612
    %v1614 = vand.u32 %v1613, 4294901760
    %1615 = vmatpush1.msra.mxu0 %v1614
    %1616 = vmatprep.subr.mxu0 0.0
    %v1617 = vand.u32 %v1460, 4294901760
    %v1618 = vsub.f32 %v1460, %v1617
    %v1619 = vand.u32 %v1618, 4294901760
    %v1620 = vsub.f32 %v1618, %v1619
    %v1621 = vand.u32 %v1620, 4294901760
    %1622 = vmatpush1.msra.mxu0 %v1621
    %1623 = vmatprep.subr.mxu0 0.0
    %v1624 = vand.u32 %v1461, 4294901760
    %v1625 = vsub.f32 %v1461, %v1624
    %v1626 = vand.u32 %v1625, 4294901760
    %v1627 = vsub.f32 %v1625, %v1626
    %v1628 = vand.u32 %v1627, 4294901760
    %1629 = vmatpush1.msra.mxu0 %v1628
    %1630 = vmatprep.subr.mxu0 0.0
    %v1631 = vand.u32 %v1462, 4294901760
    %v1632 = vsub.f32 %v1462, %v1631
    %v1633 = vand.u32 %v1632, 4294901760
    %v1634 = vsub.f32 %v1632, %v1633
    %v1635 = vand.u32 %v1634, 4294901760
    %1636 = vmatpush1.msra.mxu0 %v1635
    %1637 = vmatprep.subr.mxu0 0.0
    %v1638 = vand.u32 %v1463, 4294901760
    %v1639 = vsub.f32 %v1463, %v1638
    %v1640 = vand.u32 %v1639, 4294901760
    %v1641 = vsub.f32 %v1639, %v1640
    %v1642 = vand.u32 %v1641, 4294901760
    %1643 = vmatpush1.msra.mxu0 %v1642
    %1644 = vmatprep.subr.mxu0 0.0
    %v1645 = vand.u32 %v1464, 4294901760
    %v1646 = vsub.f32 %v1464, %v1645
    %v1647 = vand.u32 %v1646, 4294901760
    %v1648 = vsub.f32 %v1646, %v1647
    %v1649 = vand.u32 %v1648, 4294901760
    %1650 = vmatpush1.msra.mxu0 %v1649
    %1651 = vmatprep.subr.mxu0 0.0
    %v1652 = vand.u32 %v1465, 4294901760
    %v1653 = vsub.f32 %v1465, %v1652
    %v1654 = vand.u32 %v1653, 4294901760
    %v1655 = vsub.f32 %v1653, %v1654
    %v1656 = vand.u32 %v1655, 4294901760
    %1657 = vmatpush1.msra.mxu0 %v1656
    %1658 = vmatprep.subr.mxu0 0.0
    %v1659 = vand.u32 %v1466, 4294901760
    %v1660 = vsub.f32 %v1466, %v1659
    %v1661 = vand.u32 %v1660, 4294901760
    %v1662 = vsub.f32 %v1660, %v1661
    %v1663 = vand.u32 %v1662, 4294901760
    %1664 = vmatpush1.msra.mxu0 %v1663
    %1665 = vmatprep.subr.mxu0 0.0
    %v1666 = vand.u32 %v1467, 4294901760
    %v1667 = vsub.f32 %v1467, %v1666
    %v1668 = vand.u32 %v1667, 4294901760
    %v1669 = vsub.f32 %v1667, %v1668
    %v1670 = vand.u32 %v1669, 4294901760
    %1671 = vmatpush1.msra.mxu0 %v1670
    %1672 = vmatprep.subr.mxu0 0.0
    %v1673 = vand.u32 %v1468, 4294901760
    %v1674 = vsub.f32 %v1468, %v1673
    %v1675 = vand.u32 %v1674, 4294901760
    %v1676 = vsub.f32 %v1674, %v1675
    %v1677 = vand.u32 %v1676, 4294901760
    %1678 = vmatpush1.msra.mxu0 %v1677
    %1679 = vmatprep.subr.mxu0 0.0
    %v1680 = vand.u32 %v1469, 4294901760
    %v1681 = vsub.f32 %v1469, %v1680
    %v1682 = vand.u32 %v1681, 4294901760
    %v1683 = vsub.f32 %v1681, %v1682
    %v1684 = vand.u32 %v1683, 4294901760
    %1685 = vmatpush1.msra.mxu0 %v1684
    %1686 = vmatprep.subr.mxu0 0.0
    %v1687 = vand.u32 %v1470, 4294901760
    %v1688 = vsub.f32 %v1470, %v1687
    %v1689 = vand.u32 %v1688, 4294901760
    %v1690 = vsub.f32 %v1688, %v1689
    %v1691 = vand.u32 %v1690, 4294901760
    %1692 = vmatpush1.msra.mxu0 %v1691
    %1693 = vmatprep.subr.mxu0 0.0
    %v1694 = vand.u32 %v1471, 4294901760
    %v1695 = vsub.f32 %v1471, %v1694
    %v1696 = vand.u32 %v1695, 4294901760
    %v1697 = vsub.f32 %v1695, %v1696
    %v1698 = vand.u32 %v1697, 4294901760
    %1699 = vmatpush1.msra.mxu0 %v1698
    %1700 = vmatprep.subr.mxu0 0.0
    %v1701 = vand.u32 %v1472, 4294901760
    %v1702 = vsub.f32 %v1472, %v1701
    %v1703 = vand.u32 %v1702, 4294901760
    %v1704 = vsub.f32 %v1702, %v1703
    %v1705 = vand.u32 %v1704, 4294901760
    %1706 = vmatpush1.msra.mxu0 %v1705
    %1707 = vmatprep.subr.mxu0 0.0
    %v1708 = vand.u32 %v1473, 4294901760
    %v1709 = vsub.f32 %v1473, %v1708
    %v1710 = vand.u32 %v1709, 4294901760
    %v1711 = vsub.f32 %v1709, %v1710
    %v1712 = vand.u32 %v1711, 4294901760
    %1713 = vmatpush1.msra.mxu0 %v1712
    %1714 = vmatprep.subr.mxu0 0.0
    %v1715 = vand.u32 %v1474, 4294901760
    %v1716 = vsub.f32 %v1474, %v1715
    %v1717 = vand.u32 %v1716, 4294901760
    %v1718 = vsub.f32 %v1716, %v1717
    %v1719 = vand.u32 %v1718, 4294901760
    %1720 = vmatpush1.msra.mxu0 %v1719
    %1721 = vmatprep.subr.mxu0 0.0
    %v1722 = vand.u32 %v1475, 4294901760
    %v1723 = vsub.f32 %v1475, %v1722
    %v1724 = vand.u32 %v1723, 4294901760
    %v1725 = vsub.f32 %v1723, %v1724
    %v1726 = vand.u32 %v1725, 4294901760
    %1727 = vmatpush1.msra.mxu0 %v1726
    %1728 = vmatprep.subr.mxu0 0.0
    %v1729 = vand.u32 %v1476, 4294901760
    %v1730 = vsub.f32 %v1476, %v1729
    %v1731 = vand.u32 %v1730, 4294901760
    %v1732 = vsub.f32 %v1730, %v1731
    %v1733 = vand.u32 %v1732, 4294901760
    %1734 = vmatpush1.msra.mxu0 %v1733
    %1735 = vmatprep.subr.mxu0 0.0
    %v1736 = vand.u32 %v1477, 4294901760
    %v1737 = vsub.f32 %v1477, %v1736
    %v1738 = vand.u32 %v1737, 4294901760
    %v1739 = vsub.f32 %v1737, %v1738
    %v1740 = vand.u32 %v1739, 4294901760
    %1741 = vmatpush1.msra.mxu0 %v1740
    %1742 = vmatprep.subr.mxu0 0.0
    %v1743 = vand.u32 %v1478, 4294901760
    %v1744 = vsub.f32 %v1478, %v1743
    %v1745 = vand.u32 %v1744, 4294901760
    %v1746 = vsub.f32 %v1744, %v1745
    %v1747 = vand.u32 %v1746, 4294901760
    %1748 = vmatpush1.msra.mxu0 %v1747
    %1749 = vmatprep.subr.mxu0 0.0
    %v1750 = vand.u32 %v1479, 4294901760
    %v1751 = vsub.f32 %v1479, %v1750
    %v1752 = vand.u32 %v1751, 4294901760
    %v1753 = vsub.f32 %v1751, %v1752
    %v1754 = vand.u32 %v1753, 4294901760
    %1755 = vmatpush1.msra.mxu0 %v1754
    %1756 = vmatprep.subr.mxu0 0.0
    %v1757 = vand.u32 %v1480, 4294901760
    %v1758 = vsub.f32 %v1480, %v1757
    %v1759 = vand.u32 %v1758, 4294901760
    %v1760 = vsub.f32 %v1758, %v1759
    %v1761 = vand.u32 %v1760, 4294901760
    %1762 = vmatpush1.msra.mxu0 %v1761
    %1763 = vmatprep.subr.mxu0 0.0
    %v1764 = vand.u32 %v1481, 4294901760
    %v1765 = vsub.f32 %v1481, %v1764
    %v1766 = vand.u32 %v1765, 4294901760
    %v1767 = vsub.f32 %v1765, %v1766
    %v1768 = vand.u32 %v1767, 4294901760
    %1769 = vmatpush1.msra.mxu0 %v1768
    %1770 = vmatprep.subr.mxu0 0.0
    %v1771 = vand.u32 %v1482, 4294901760
    %v1772 = vsub.f32 %v1482, %v1771
    %v1773 = vand.u32 %v1772, 4294901760
    %v1774 = vsub.f32 %v1772, %v1773
    %v1775 = vand.u32 %v1774, 4294901760
    %1776 = vmatpush1.msra.mxu0 %v1775
    %1777 = vmatprep.subr.mxu0 0.0
    %v1778 = vand.u32 %v1483, 4294901760
    %v1779 = vsub.f32 %v1483, %v1778
    %v1780 = vand.u32 %v1779, 4294901760
    %v1781 = vsub.f32 %v1779, %v1780
    %v1782 = vand.u32 %v1781, 4294901760
    %1783 = vmatpush1.msra.mxu0 %v1782
    %1784 = vmatprep.subr.mxu0 0.0
    %v1785 = vand.u32 %v1484, 4294901760
    %v1786 = vsub.f32 %v1484, %v1785
    %v1787 = vand.u32 %v1786, 4294901760
    %v1788 = vsub.f32 %v1786, %v1787
    %v1789 = vand.u32 %v1788, 4294901760
    %1790 = vmatpush1.msra.mxu0 %v1789
    %1791 = vmatprep.subr.mxu0 0.0
    %v1792 = vand.u32 %v1485, 4294901760
    %v1793 = vsub.f32 %v1485, %v1792
    %v1794 = vand.u32 %v1793, 4294901760
    %v1795 = vsub.f32 %v1793, %v1794
    %v1796 = vand.u32 %v1795, 4294901760
    %1797 = vmatpush1.msra.mxu0 %v1796
    %1798 = vmatprep.subr.mxu0 0.0
    %v1799 = vand.u32 %v1486, 4294901760
    %v1800 = vsub.f32 %v1486, %v1799
    %v1801 = vand.u32 %v1800, 4294901760
    %v1802 = vsub.f32 %v1800, %v1801
    %v1803 = vand.u32 %v1802, 4294901760
    %1804 = vmatpush1.msra.mxu0 %v1803
    %1805 = vmatprep.subr.mxu0 0.0
    %v1806 = vand.u32 %v1487, 4294901760
    %v1807 = vsub.f32 %v1487, %v1806
    %v1808 = vand.u32 %v1807, 4294901760
    %v1809 = vsub.f32 %v1807, %v1808
    %v1810 = vand.u32 %v1809, 4294901760
    %1811 = vmatpush1.msra.mxu0 %v1810
    %1812 = vmatprep.subr.mxu0 0.0
    %v1813 = vand.u32 %v1488, 4294901760
    %v1814 = vsub.f32 %v1488, %v1813
    %v1815 = vand.u32 %v1814, 4294901760
    %v1816 = vsub.f32 %v1814, %v1815
    %v1817 = vand.u32 %v1816, 4294901760
    %1818 = vmatpush1.msra.mxu0 %v1817
    %1819 = vmatprep.subr.mxu0 0.0
    %v1820 = vand.u32 %v1489, 4294901760
    %v1821 = vsub.f32 %v1489, %v1820
    %v1822 = vand.u32 %v1821, 4294901760
    %v1823 = vsub.f32 %v1821, %v1822
    %v1824 = vand.u32 %v1823, 4294901760
    %1825 = vmatpush1.msra.mxu0 %v1824
    %v1826 = vand.u32 %v1456, 4294901760
    %1827 = vmatprep.mubr.f32.mxu0 %v1826
    %v1828 = vand.u32 %v1455, 4294901760
    %1829 = vmatmul.mubr.f32.gmra.mrb[0].mxu0 %v1828
    %v1830 = vpop.f32.mrb[0].mxu0
    %v1831 = vadd.f32 %v1599, %v1830
    %v1832 = vpop.f32.mrb[0].mxu0
    %1833 = vdwg.mxu0
    %1834 = vmatprep.subr.mxu0 0.0
    %v1835 = vand.u32 %v1458, 4294901760
    %v1836 = vsub.f32 %v1458, %v1835
    %1837 = vmatpush1.msra.mxu0 %v1836
    %1838 = vmatprep.subr.mxu0 0.0
    %v1839 = vand.u32 %v1459, 4294901760
    %v1840 = vsub.f32 %v1459, %v1839
    %1841 = vmatpush1.msra.mxu0 %v1840
    %1842 = vmatprep.subr.mxu0 0.0
    %v1843 = vand.u32 %v1460, 4294901760
    %v1844 = vsub.f32 %v1460, %v1843
    %1845 = vmatpush1.msra.mxu0 %v1844
    %1846 = vmatprep.subr.mxu0 0.0
    %v1847 = vand.u32 %v1461, 4294901760
    %v1848 = vsub.f32 %v1461, %v1847
    %1849 = vmatpush1.msra.mxu0 %v1848
    %1850 = vmatprep.subr.mxu0 0.0
    %v1851 = vand.u32 %v1462, 4294901760
    %v1852 = vsub.f32 %v1462, %v1851
    %1853 = vmatpush1.msra.mxu0 %v1852
    %1854 = vmatprep.subr.mxu0 0.0
    %v1855 = vand.u32 %v1463, 4294901760
    %v1856 = vsub.f32 %v1463, %v1855
    %1857 = vmatpush1.msra.mxu0 %v1856
    %1858 = vmatprep.subr.mxu0 0.0
    %v1859 = vand.u32 %v1464, 4294901760
    %v1860 = vsub.f32 %v1464, %v1859
    %1861 = vmatpush1.msra.mxu0 %v1860
    %1862 = vmatprep.subr.mxu0 0.0
    %v1863 = vand.u32 %v1465, 4294901760
    %v1864 = vsub.f32 %v1465, %v1863
    %1865 = vmatpush1.msra.mxu0 %v1864
    %1866 = vmatprep.subr.mxu0 0.0
    %v1867 = vand.u32 %v1466, 4294901760
    %v1868 = vsub.f32 %v1466, %v1867
    %1869 = vmatpush1.msra.mxu0 %v1868
    %1870 = vmatprep.subr.mxu0 0.0
    %v1871 = vand.u32 %v1467, 4294901760
    %v1872 = vsub.f32 %v1467, %v1871
    %1873 = vmatpush1.msra.mxu0 %v1872
    %1874 = vmatprep.subr.mxu0 0.0
    %v1875 = vand.u32 %v1468, 4294901760
    %v1876 = vsub.f32 %v1468, %v1875
    %1877 = vmatpush1.msra.mxu0 %v1876
    %1878 = vmatprep.subr.mxu0 0.0
    %v1879 = vand.u32 %v1469, 4294901760
    %v1880 = vsub.f32 %v1469, %v1879
    %1881 = vmatpush1.msra.mxu0 %v1880
    %1882 = vmatprep.subr.mxu0 0.0
    %v1883 = vand.u32 %v1470, 4294901760
    %v1884 = vsub.f32 %v1470, %v1883
    %1885 = vmatpush1.msra.mxu0 %v1884
    %1886 = vmatprep.subr.mxu0 0.0
    %v1887 = vand.u32 %v1471, 4294901760
    %v1888 = vsub.f32 %v1471, %v1887
    %1889 = vmatpush1.msra.mxu0 %v1888
    %1890 = vmatprep.subr.mxu0 0.0
    %v1891 = vand.u32 %v1472, 4294901760
    %v1892 = vsub.f32 %v1472, %v1891
    %1893 = vmatpush1.msra.mxu0 %v1892
    %1894 = vmatprep.subr.mxu0 0.0
    %v1895 = vand.u32 %v1473, 4294901760
    %v1896 = vsub.f32 %v1473, %v1895
    %1897 = vmatpush1.msra.mxu0 %v1896
    %1898 = vmatprep.subr.mxu0 0.0
    %v1899 = vand.u32 %v1474, 4294901760
    %v1900 = vsub.f32 %v1474, %v1899
    %1901 = vmatpush1.msra.mxu0 %v1900
    %1902 = vmatprep.subr.mxu0 0.0
    %v1903 = vand.u32 %v1475, 4294901760
    %v1904 = vsub.f32 %v1475, %v1903
    %1905 = vmatpush1.msra.mxu0 %v1904
    %1906 = vmatprep.subr.mxu0 0.0
    %v1907 = vand.u32 %v1476, 4294901760
    %v1908 = vsub.f32 %v1476, %v1907
    %1909 = vmatpush1.msra.mxu0 %v1908
    %1910 = vmatprep.subr.mxu0 0.0
    %v1911 = vand.u32 %v1477, 4294901760
    %v1912 = vsub.f32 %v1477, %v1911
    %1913 = vmatpush1.msra.mxu0 %v1912
    %1914 = vmatprep.subr.mxu0 0.0
    %v1915 = vand.u32 %v1478, 4294901760
    %v1916 = vsub.f32 %v1478, %v1915
    %1917 = vmatpush1.msra.mxu0 %v1916
    %1918 = vmatprep.subr.mxu0 0.0
    %v1919 = vand.u32 %v1479, 4294901760
    %v1920 = vsub.f32 %v1479, %v1919
    %1921 = vmatpush1.msra.mxu0 %v1920
    %1922 = vmatprep.subr.mxu0 0.0
    %v1923 = vand.u32 %v1480, 4294901760
    %v1924 = vsub.f32 %v1480, %v1923
    %1925 = vmatpush1.msra.mxu0 %v1924
    %1926 = vmatprep.subr.mxu0 0.0
    %v1927 = vand.u32 %v1481, 4294901760
    %v1928 = vsub.f32 %v1481, %v1927
    %1929 = vmatpush1.msra.mxu0 %v1928
    %1930 = vmatprep.subr.mxu0 0.0
    %v1931 = vand.u32 %v1482, 4294901760
    %v1932 = vsub.f32 %v1482, %v1931
    %1933 = vmatpush1.msra.mxu0 %v1932
    %1934 = vmatprep.subr.mxu0 0.0
    %v1935 = vand.u32 %v1483, 4294901760
    %v1936 = vsub.f32 %v1483, %v1935
    %1937 = vmatpush1.msra.mxu0 %v1936
    %1938 = vmatprep.subr.mxu0 0.0
    %v1939 = vand.u32 %v1484, 4294901760
    %v1940 = vsub.f32 %v1484, %v1939
    %1941 = vmatpush1.msra.mxu0 %v1940
    %1942 = vmatprep.subr.mxu0 0.0
    %v1943 = vand.u32 %v1485, 4294901760
    %v1944 = vsub.f32 %v1485, %v1943
    %1945 = vmatpush1.msra.mxu0 %v1944
    %1946 = vmatprep.subr.mxu0 0.0
    %v1947 = vand.u32 %v1486, 4294901760
    %v1948 = vsub.f32 %v1486, %v1947
    %1949 = vmatpush1.msra.mxu0 %v1948
    %1950 = vmatprep.subr.mxu0 0.0
    %v1951 = vand.u32 %v1487, 4294901760
    %v1952 = vsub.f32 %v1487, %v1951
    %1953 = vmatpush1.msra.mxu0 %v1952
    %1954 = vmatprep.subr.mxu0 0.0
    %v1955 = vand.u32 %v1488, 4294901760
    %v1956 = vsub.f32 %v1488, %v1955
    %1957 = vmatpush1.msra.mxu0 %v1956
    %1958 = vmatprep.subr.mxu0 0.0
    %v1959 = vand.u32 %v1489, 4294901760
    %v1960 = vsub.f32 %v1489, %v1959
    %1961 = vmatpush1.msra.mxu0 %v1960
    %v1962 = vand.u32 %v1456, 4294901760
    %v1963 = vsub.f32 %v1456, %v1962
    %1964 = vmatprep.mubr.f32.mxu0 %v1963
    %v1965 = vand.u32 %v1455, 4294901760
    %v1966 = vsub.f32 %v1455, %v1965
    %1967 = vmatmul.mubr.f32.gmra.mrb[0].mxu0 %v1966
    %v1968 = vpop.f32.mrb[0].mxu0
    %v1969 = vadd.f32 %v1831, %v1968
    %v1970 = vpop.f32.mrb[0].mxu0
    %1971 = vdwg.mxu0
    %1972 = vmatprep.subr.mxu0 0.0
    %v1973 = vand.u32 %v1458, 4294901760
    %1974 = vmatpush1.msra.mxu0 %v1973
    %1975 = vmatprep.subr.mxu0 0.0
    %v1976 = vand.u32 %v1459, 4294901760
    %1977 = vmatpush1.msra.mxu0 %v1976
    %1978 = vmatprep.subr.mxu0 0.0
    %v1979 = vand.u32 %v1460, 4294901760
    %1980 = vmatpush1.msra.mxu0 %v1979
    %1981 = vmatprep.subr.mxu0 0.0
    %v1982 = vand.u32 %v1461, 4294901760
    %1983 = vmatpush1.msra.mxu0 %v1982
    %1984 = vmatprep.subr.mxu0 0.0
    %v1985 = vand.u32 %v1462, 4294901760
    %1986 = vmatpush1.msra.mxu0 %v1985
    %1987 = vmatprep.subr.mxu0 0.0
    %v1988 = vand.u32 %v1463, 4294901760
    %1989 = vmatpush1.msra.mxu0 %v1988
    %1990 = vmatprep.subr.mxu0 0.0
    %v1991 = vand.u32 %v1464, 4294901760
    %1992 = vmatpush1.msra.mxu0 %v1991
    %1993 = vmatprep.subr.mxu0 0.0
    %v1994 = vand.u32 %v1465, 4294901760
    %1995 = vmatpush1.msra.mxu0 %v1994
    %1996 = vmatprep.subr.mxu0 0.0
    %v1997 = vand.u32 %v1466, 4294901760
    %1998 = vmatpush1.msra.mxu0 %v1997
    %1999 = vmatprep.subr.mxu0 0.0
    %v2000 = vand.u32 %v1467, 4294901760
    %2001 = vmatpush1.msra.mxu0 %v2000
    %2002 = vmatprep.subr.mxu0 0.0
    %v2003 = vand.u32 %v1468, 4294901760
    %2004 = vmatpush1.msra.mxu0 %v2003
    %2005 = vmatprep.subr.mxu0 0.0
    %v2006 = vand.u32 %v1469, 4294901760
    %2007 = vmatpush1.msra.mxu0 %v2006
    %2008 = vmatprep.subr.mxu0 0.0
    %v2009 = vand.u32 %v1470, 4294901760
    %2010 = vmatpush1.msra.mxu0 %v2009
    %2011 = vmatprep.subr.mxu0 0.0
    %v2012 = vand.u32 %v1471, 4294901760
    %2013 = vmatpush1.msra.mxu0 %v2012
    %2014 = vmatprep.subr.mxu0 0.0
    %v2015 = vand.u32 %v1472, 4294901760
    %2016 = vmatpush1.msra.mxu0 %v2015
    %2017 = vmatprep.subr.mxu0 0.0
    %v2018 = vand.u32 %v1473, 4294901760
    %2019 = vmatpush1.msra.mxu0 %v2018
    %2020 = vmatprep.subr.mxu0 0.0
    %v2021 = vand.u32 %v1474, 4294901760
    %2022 = vmatpush1.msra.mxu0 %v2021
    %2023 = vmatprep.subr.mxu0 0.0
    %v2024 = vand.u32 %v1475, 4294901760
    %2025 = vmatpush1.msra.mxu0 %v2024
    %2026 = vmatprep.subr.mxu0 0.0
    %v2027 = vand.u32 %v1476, 4294901760
    %2028 = vmatpush1.msra.mxu0 %v2027
    %2029 = vmatprep.subr.mxu0 0.0
    %v2030 = vand.u32 %v1477, 4294901760
    %2031 = vmatpush1.msra.mxu0 %v2030
    %2032 = vmatprep.subr.mxu0 0.0
    %v2033 = vand.u32 %v1478, 4294901760
    %2034 = vmatpush1.msra.mxu0 %v2033
    %2035 = vmatprep.subr.mxu0 0.0
    %v2036 = vand.u32 %v1479, 4294901760
    %2037 = vmatpush1.msra.mxu0 %v2036
    %2038 = vmatprep.subr.mxu0 0.0
    %v2039 = vand.u32 %v1480, 4294901760
    %2040 = vmatpush1.msra.mxu0 %v2039
    %2041 = vmatprep.subr.mxu0 0.0
    %v2042 = vand.u32 %v1481, 4294901760
    %2043 = vmatpush1.msra.mxu0 %v2042
    %2044 = vmatprep.subr.mxu0 0.0
    %v2045 = vand.u32 %v1482, 4294901760
    %2046 = vmatpush1.msra.mxu0 %v2045
    %2047 = vmatprep.subr.mxu0 0.0
    %v2048 = vand.u32 %v1483, 4294901760
    %2049 = vmatpush1.msra.mxu0 %v2048
    %2050 = vmatprep.subr.mxu0 0.0
    %v2051 = vand.u32 %v1484, 4294901760
    %2052 = vmatpush1.msra.mxu0 %v2051
    %2053 = vmatprep.subr.mxu0 0.0
    %v2054 = vand.u32 %v1485, 4294901760
    %2055 = vmatpush1.msra.mxu0 %v2054
    %2056 = vmatprep.subr.mxu0 0.0
    %v2057 = vand.u32 %v1486, 4294901760
    %2058 = vmatpush1.msra.mxu0 %v2057
    %2059 = vmatprep.subr.mxu0 0.0
    %v2060 = vand.u32 %v1487, 4294901760
    %2061 = vmatpush1.msra.mxu0 %v2060
    %2062 = vmatprep.subr.mxu0 0.0
    %v2063 = vand.u32 %v1488, 4294901760
    %2064 = vmatpush1.msra.mxu0 %v2063
    %2065 = vmatprep.subr.mxu0 0.0
    %v2066 = vand.u32 %v1489, 4294901760
    %2067 = vmatpush1.msra.mxu0 %v2066
    %v2068 = vand.u32 %v1456, 4294901760
    %v2069 = vsub.f32 %v1456, %v2068
    %v2070 = vand.u32 %v2069, 4294901760
    %2071 = vmatprep.mubr.f32.mxu0 %v2070
    %v2072 = vand.u32 %v1455, 4294901760
    %v2073 = vsub.f32 %v1455, %v2072
    %v2074 = vand.u32 %v2073, 4294901760
    %2075 = vmatmul.mubr.f32.gmra.mrb[0].mxu0 %v2074
    %v2076 = vpop.f32.mrb[0].mxu0
    %v2077 = vadd.f32 %v1969, %v2076
    %v2078 = vpop.f32.mrb[0].mxu0
    %2079 = vdwg.mxu0
    %2080 = vmatprep.subr.mxu0 0.0
    %v2081 = vand.u32 %v1458, 4294901760
    %v2082 = vsub.f32 %v1458, %v2081
    %v2083 = vand.u32 %v2082, 4294901760
    %2084 = vmatpush1.msra.mxu0 %v2083
    %2085 = vmatprep.subr.mxu0 0.0
    %v2086 = vand.u32 %v1459, 4294901760
    %v2087 = vsub.f32 %v1459, %v2086
    %v2088 = vand.u32 %v2087, 4294901760
    %2089 = vmatpush1.msra.mxu0 %v2088
    %2090 = vmatprep.subr.mxu0 0.0
    %v2091 = vand.u32 %v1460, 4294901760
    %v2092 = vsub.f32 %v1460, %v2091
    %v2093 = vand.u32 %v2092, 4294901760
    %2094 = vmatpush1.msra.mxu0 %v2093
    %2095 = vmatprep.subr.mxu0 0.0
    %v2096 = vand.u32 %v1461, 4294901760
    %v2097 = vsub.f32 %v1461, %v2096
    %v2098 = vand.u32 %v2097, 4294901760
    %2099 = vmatpush1.msra.mxu0 %v2098
    %2100 = vmatprep.subr.mxu0 0.0
    %v2101 = vand.u32 %v1462, 4294901760
    %v2102 = vsub.f32 %v1462, %v2101
    %v2103 = vand.u32 %v2102, 4294901760
    %2104 = vmatpush1.msra.mxu0 %v2103
    %2105 = vmatprep.subr.mxu0 0.0
    %v2106 = vand.u32 %v1463, 4294901760
    %v2107 = vsub.f32 %v1463, %v2106
    %v2108 = vand.u32 %v2107, 4294901760
    %2109 = vmatpush1.msra.mxu0 %v2108
    %2110 = vmatprep.subr.mxu0 0.0
    %v2111 = vand.u32 %v1464, 4294901760
    %v2112 = vsub.f32 %v1464, %v2111
    %v2113 = vand.u32 %v2112, 4294901760
    %2114 = vmatpush1.msra.mxu0 %v2113
    %2115 = vmatprep.subr.mxu0 0.0
    %v2116 = vand.u32 %v1465, 4294901760
    %v2117 = vsub.f32 %v1465, %v2116
    %v2118 = vand.u32 %v2117, 4294901760
    %2119 = vmatpush1.msra.mxu0 %v2118
    %2120 = vmatprep.subr.mxu0 0.0
    %v2121 = vand.u32 %v1466, 4294901760
    %v2122 = vsub.f32 %v1466, %v2121
    %v2123 = vand.u32 %v2122, 4294901760
    %2124 = vmatpush1.msra.mxu0 %v2123
    %2125 = vmatprep.subr.mxu0 0.0
    %v2126 = vand.u32 %v1467, 4294901760
    %v2127 = vsub.f32 %v1467, %v2126
    %v2128 = vand.u32 %v2127, 4294901760
    %2129 = vmatpush1.msra.mxu0 %v2128
    %2130 = vmatprep.subr.mxu0 0.0
    %v2131 = vand.u32 %v1468, 4294901760
    %v2132 = vsub.f32 %v1468, %v2131
    %v2133 = vand.u32 %v2132, 4294901760
    %2134 = vmatpush1.msra.mxu0 %v2133
    %2135 = vmatprep.subr.mxu0 0.0
    %v2136 = vand.u32 %v1469, 4294901760
    %v2137 = vsub.f32 %v1469, %v2136
    %v2138 = vand.u32 %v2137, 4294901760
    %2139 = vmatpush1.msra.mxu0 %v2138
    %2140 = vmatprep.subr.mxu0 0.0
    %v2141 = vand.u32 %v1470, 4294901760
    %v2142 = vsub.f32 %v1470, %v2141
    %v2143 = vand.u32 %v2142, 4294901760
    %2144 = vmatpush1.msra.mxu0 %v2143
    %2145 = vmatprep.subr.mxu0 0.0
    %v2146 = vand.u32 %v1471, 4294901760
    %v2147 = vsub.f32 %v1471, %v2146
    %v2148 = vand.u32 %v2147, 4294901760
    %2149 = vmatpush1.msra.mxu0 %v2148
    %2150 = vmatprep.subr.mxu0 0.0
    %v2151 = vand.u32 %v1472, 4294901760
    %v2152 = vsub.f32 %v1472, %v2151
    %v2153 = vand.u32 %v2152, 4294901760
    %2154 = vmatpush1.msra.mxu0 %v2153
    %2155 = vmatprep.subr.mxu0 0.0
    %v2156 = vand.u32 %v1473, 4294901760
    %v2157 = vsub.f32 %v1473, %v2156
    %v2158 = vand.u32 %v2157, 4294901760
    %2159 = vmatpush1.msra.mxu0 %v2158
    %2160 = vmatprep.subr.mxu0 0.0
    %v2161 = vand.u32 %v1474, 4294901760
    %v2162 = vsub.f32 %v1474, %v2161
    %v2163 = vand.u32 %v2162, 4294901760
    %2164 = vmatpush1.msra.mxu0 %v2163
    %2165 = vmatprep.subr.mxu0 0.0
    %v2166 = vand.u32 %v1475, 4294901760
    %v2167 = vsub.f32 %v1475, %v2166
    %v2168 = vand.u32 %v2167, 4294901760
    %2169 = vmatpush1.msra.mxu0 %v2168
    %2170 = vmatprep.subr.mxu0 0.0
    %v2171 = vand.u32 %v1476, 4294901760
    %v2172 = vsub.f32 %v1476, %v2171
    %v2173 = vand.u32 %v2172, 4294901760
    %2174 = vmatpush1.msra.mxu0 %v2173
    %2175 = vmatprep.subr.mxu0 0.0
    %v2176 = vand.u32 %v1477, 4294901760
    %v2177 = vsub.f32 %v1477, %v2176
    %v2178 = vand.u32 %v2177, 4294901760
    %2179 = vmatpush1.msra.mxu0 %v2178
    %2180 = vmatprep.subr.mxu0 0.0
    %v2181 = vand.u32 %v1478, 4294901760
    %v2182 = vsub.f32 %v1478, %v2181
    %v2183 = vand.u32 %v2182, 4294901760
    %2184 = vmatpush1.msra.mxu0 %v2183
    %2185 = vmatprep.subr.mxu0 0.0
    %v2186 = vand.u32 %v1479, 4294901760
    %v2187 = vsub.f32 %v1479, %v2186
    %v2188 = vand.u32 %v2187, 4294901760
    %2189 = vmatpush1.msra.mxu0 %v2188
    %2190 = vmatprep.subr.mxu0 0.0
    %v2191 = vand.u32 %v1480, 4294901760
    %v2192 = vsub.f32 %v1480, %v2191
    %v2193 = vand.u32 %v2192, 4294901760
    %2194 = vmatpush1.msra.mxu0 %v2193
    %2195 = vmatprep.subr.mxu0 0.0
    %v2196 = vand.u32 %v1481, 4294901760
    %v2197 = vsub.f32 %v1481, %v2196
    %v2198 = vand.u32 %v2197, 4294901760
    %2199 = vmatpush1.msra.mxu0 %v2198
    %2200 = vmatprep.subr.mxu0 0.0
    %v2201 = vand.u32 %v1482, 4294901760
    %v2202 = vsub.f32 %v1482, %v2201
    %v2203 = vand.u32 %v2202, 4294901760
    %2204 = vmatpush1.msra.mxu0 %v2203
    %2205 = vmatprep.subr.mxu0 0.0
    %v2206 = vand.u32 %v1483, 4294901760
    %v2207 = vsub.f32 %v1483, %v2206
    %v2208 = vand.u32 %v2207, 4294901760
    %2209 = vmatpush1.msra.mxu0 %v2208
    %2210 = vmatprep.subr.mxu0 0.0
    %v2211 = vand.u32 %v1484, 4294901760
    %v2212 = vsub.f32 %v1484, %v2211
    %v2213 = vand.u32 %v2212, 4294901760
    %2214 = vmatpush1.msra.mxu0 %v2213
    %2215 = vmatprep.subr.mxu0 0.0
    %v2216 = vand.u32 %v1485, 4294901760
    %v2217 = vsub.f32 %v1485, %v2216
    %v2218 = vand.u32 %v2217, 4294901760
    %2219 = vmatpush1.msra.mxu0 %v2218
    %2220 = vmatprep.subr.mxu0 0.0
    %v2221 = vand.u32 %v1486, 4294901760
    %v2222 = vsub.f32 %v1486, %v2221
    %v2223 = vand.u32 %v2222, 4294901760
    %2224 = vmatpush1.msra.mxu0 %v2223
    %2225 = vmatprep.subr.mxu0 0.0
    %v2226 = vand.u32 %v1487, 4294901760
    %v2227 = vsub.f32 %v1487, %v2226
    %v2228 = vand.u32 %v2227, 4294901760
    %2229 = vmatpush1.msra.mxu0 %v2228
    %2230 = vmatprep.subr.mxu0 0.0
    %v2231 = vand.u32 %v1488, 4294901760
    %v2232 = vsub.f32 %v1488, %v2231
    %v2233 = vand.u32 %v2232, 4294901760
    %2234 = vmatpush1.msra.mxu0 %v2233
    %2235 = vmatprep.subr.mxu0 0.0
    %v2236 = vand.u32 %v1489, 4294901760
    %v2237 = vsub.f32 %v1489, %v2236
    %v2238 = vand.u32 %v2237, 4294901760
    %2239 = vmatpush1.msra.mxu0 %v2238
    %v2240 = vand.u32 %v1456, 4294901760
    %2241 = vmatprep.mubr.f32.mxu0 %v2240
    %v2242 = vand.u32 %v1455, 4294901760
    %2243 = vmatmul.mubr.f32.gmra.mrb[0].mxu0 %v2242
    %v2244 = vpop.f32.mrb[0].mxu0
    %v2245 = vadd.f32 %v2077, %v2244
    %v2246 = vpop.f32.mrb[0].mxu0
    %2247 = vdwg.mxu0
    %2248 = vmatprep.subr.mxu0 0.0
    %v2249 = vand.u32 %v1458, 4294901760
    %2250 = vmatpush1.msra.mxu0 %v2249
    %2251 = vmatprep.subr.mxu0 0.0
    %v2252 = vand.u32 %v1459, 4294901760
    %2253 = vmatpush1.msra.mxu0 %v2252
    %2254 = vmatprep.subr.mxu0 0.0
    %v2255 = vand.u32 %v1460, 4294901760
    %2256 = vmatpush1.msra.mxu0 %v2255
    %2257 = vmatprep.subr.mxu0 0.0
    %v2258 = vand.u32 %v1461, 4294901760
    %2259 = vmatpush1.msra.mxu0 %v2258
    %2260 = vmatprep.subr.mxu0 0.0
    %v2261 = vand.u32 %v1462, 4294901760
    %2262 = vmatpush1.msra.mxu0 %v2261
    %2263 = vmatprep.subr.mxu0 0.0
    %v2264 = vand.u32 %v1463, 4294901760
    %2265 = vmatpush1.msra.mxu0 %v2264
    %2266 = vmatprep.subr.mxu0 0.0
    %v2267 = vand.u32 %v1464, 4294901760
    %2268 = vmatpush1.msra.mxu0 %v2267
    %2269 = vmatprep.subr.mxu0 0.0
    %v2270 = vand.u32 %v1465, 4294901760
    %2271 = vmatpush1.msra.mxu0 %v2270
    %2272 = vmatprep.subr.mxu0 0.0
    %v2273 = vand.u32 %v1466, 4294901760
    %2274 = vmatpush1.msra.mxu0 %v2273
    %2275 = vmatprep.subr.mxu0 0.0
    %v2276 = vand.u32 %v1467, 4294901760
    %2277 = vmatpush1.msra.mxu0 %v2276
    %2278 = vmatprep.subr.mxu0 0.0
    %v2279 = vand.u32 %v1468, 4294901760
    %2280 = vmatpush1.msra.mxu0 %v2279
    %2281 = vmatprep.subr.mxu0 0.0
    %v2282 = vand.u32 %v1469, 4294901760
    %2283 = vmatpush1.msra.mxu0 %v2282
    %2284 = vmatprep.subr.mxu0 0.0
    %v2285 = vand.u32 %v1470, 4294901760
    %2286 = vmatpush1.msra.mxu0 %v2285
    %2287 = vmatprep.subr.mxu0 0.0
    %v2288 = vand.u32 %v1471, 4294901760
    %2289 = vmatpush1.msra.mxu0 %v2288
    %2290 = vmatprep.subr.mxu0 0.0
    %v2291 = vand.u32 %v1472, 4294901760
    %2292 = vmatpush1.msra.mxu0 %v2291
    %2293 = vmatprep.subr.mxu0 0.0
    %v2294 = vand.u32 %v1473, 4294901760
    %2295 = vmatpush1.msra.mxu0 %v2294
    %2296 = vmatprep.subr.mxu0 0.0
    %v2297 = vand.u32 %v1474, 4294901760
    %2298 = vmatpush1.msra.mxu0 %v2297
    %2299 = vmatprep.subr.mxu0 0.0
    %v2300 = vand.u32 %v1475, 4294901760
    %2301 = vmatpush1.msra.mxu0 %v2300
    %2302 = vmatprep.subr.mxu0 0.0
    %v2303 = vand.u32 %v1476, 4294901760
    %2304 = vmatpush1.msra.mxu0 %v2303
    %2305 = vmatprep.subr.mxu0 0.0
    %v2306 = vand.u32 %v1477, 4294901760
    %2307 = vmatpush1.msra.mxu0 %v2306
    %2308 = vmatprep.subr.mxu0 0.0
    %v2309 = vand.u32 %v1478, 4294901760
    %2310 = vmatpush1.msra.mxu0 %v2309
    %2311 = vmatprep.subr.mxu0 0.0
    %v2312 = vand.u32 %v1479, 4294901760
    %2313 = vmatpush1.msra.mxu0 %v2312
    %2314 = vmatprep.subr.mxu0 0.0
    %v2315 = vand.u32 %v1480, 4294901760
    %2316 = vmatpush1.msra.mxu0 %v2315
    %2317 = vmatprep.subr.mxu0 0.0
    %v2318 = vand.u32 %v1481, 4294901760
    %2319 = vmatpush1.msra.mxu0 %v2318
    %2320 = vmatprep.subr.mxu0 0.0
    %v2321 = vand.u32 %v1482, 4294901760
    %2322 = vmatpush1.msra.mxu0 %v2321
    %2323 = vmatprep.subr.mxu0 0.0
    %v2324 = vand.u32 %v1483, 4294901760
    %2325 = vmatpush1.msra.mxu0 %v2324
    %2326 = vmatprep.subr.mxu0 0.0
    %v2327 = vand.u32 %v1484, 4294901760
    %2328 = vmatpush1.msra.mxu0 %v2327
    %2329 = vmatprep.subr.mxu0 0.0
    %v2330 = vand.u32 %v1485, 4294901760
    %2331 = vmatpush1.msra.mxu0 %v2330
    %2332 = vmatprep.subr.mxu0 0.0
    %v2333 = vand.u32 %v1486, 4294901760
    %2334 = vmatpush1.msra.mxu0 %v2333
    %2335 = vmatprep.subr.mxu0 0.0
    %v2336 = vand.u32 %v1487, 4294901760
    %2337 = vmatpush1.msra.mxu0 %v2336
    %2338 = vmatprep.subr.mxu0 0.0
    %v2339 = vand.u32 %v1488, 4294901760
    %2340 = vmatpush1.msra.mxu0 %v2339
    %2341 = vmatprep.subr.mxu0 0.0
    %v2342 = vand.u32 %v1489, 4294901760
    %2343 = vmatpush1.msra.mxu0 %v2342
    %v2344 = vand.u32 %v1456, 4294901760
    %2345 = vmatprep.mubr.f32.mxu0 %v2344
    %v2346 = vand.u32 %v1455, 4294901760
    %2347 = vmatmul.mubr.f32.gmra.mrb[0].mxu0 %v2346
    %v2348 = vpop.f32.mrb[0].mxu0
    %v2349 = vadd.f32 %v2245, %v2348
    %v2350 = vpop.f32.mrb[0].mxu0
    %2351 = vdwg.mxu0
    %v2352 = vadd.f32 %v1457, %v2349
    %2353 = vst [vmem:[#allocation8] sm:$0xff] %v2352
    // Predicated region
    $region38: #{tpu_custom_call.1} parent=1 // pred_check
      %p2354 = pneg %p62
    $region39: #{tpu_custom_call.1} parent=1 // pred_check_branch
      %2356 = sbr.rel (%p2354) target = $region41
    $region40: #{tpu_custom_call.1} parent=1 // pred_region
      %v2357 = vld [vmem:[#allocation8] sm:$0xff]
      %v2358 = vld [vmem:[%s4] sm:$0x1]
      %v2360 = vlaneseq
      %v2361 = vshrl.u32 %v2360, 7
      %v2362 = vsub.s32 0, %v2361
      %v2363 = vrot.slane %v2358, %v2362
      %v2365 = vadd.f32 %v2357, %v2363
      %2366 = vst [vmem:[#allocation8] sm:$0xff] %v2365
    $region41: #{tpu_custom_call.1} parent=1 // pred_fallthru
      _
    // Predicated region
    $region42: #{tpu_custom_call.1} parent=1 // pred_check
      _
    $region43: #{tpu_custom_call.1} parent=1 // pred_check_branch
      %2368 = sbr.rel (0) target = $region45
    $region44: #{tpu_custom_call.1} parent=1 // pred_region
      %s2370 = ssub.s32 128, 32
      %2371 = vsyncadd [#allocation4], %s2370
      %s2372 = sshll.u32 [#allocation8], 4
      %s2373 = int_to_ptr.vmem [resolvable:$true] %s2372
      %2378 = dma.vmem_to_hbm [thread:$0]  %s2373, 32, %s5, [#allocation4], 32, 32, 2
    $region45: #{tpu_custom_call.1} parent=1 // pred_fallthru
      _
    // Predicated region
    $region46: #{tpu_custom_call.1} parent=1 // pred_check
      _
    $region47: #{tpu_custom_call.1} parent=1 // pred_check_branch
      %2380 = sbr.rel (0) target = $region49
    $region48: #{tpu_custom_call.1} parent=1 // pred_region
      %2381 = dma.done [#allocation4], 128
    $region49: #{tpu_custom_call.1} parent=1 // pred_fallthru
      _
    %2382 = vsyncpa [#allocation3], 1
    %2383 = vsyncpa [#allocation6], 1
    %2384 = vsyncpa [#allocation4], 1

</llo_original>
